<compile_context>
chip_gen: v7x
topology: tpu7x:2x2x1
jax: 0.10.0
libtpu: 0.0.40
codegen_flags: <defaults>
</compile_context>

<pallas_src>
import functools

import jax
import jax.numpy as jnp
from jax.experimental import pallas as pl
from jax.experimental.pallas import tpu as pltpu

_VMEM_LIMIT = 32 * 1024 * 1024  # safe on v5e/v6e and v7x's 64 MiB VMEM


# ----------------------------- Pallas kernels ------------------------------

def _matmul_bias_kernel(x_ref, w_ref, b_ref, o_ref, *, compute_dtype):
    """o = x @ w + b; K fits in one block (CAVER 1x1 convs: K <= 2*embed)."""
    acc = jnp.dot(x_ref[...].astype(compute_dtype),
                  w_ref[...].astype(compute_dtype),
                  preferred_element_type=jnp.float32)
    o_ref[...] = (acc + b_ref[...]).astype(o_ref.dtype)


def _fused_qkv_proj_kernel(x_ref, wq_ref, bq_ref, wkv_ref, bkv_ref,
                           q_ref, kv_ref, *, compute_dtype):
    """Read x rows once, emit both the q and the kv projections."""
    x = x_ref[...].astype(compute_dtype)
    q = jnp.dot(x, wq_ref[...].astype(compute_dtype),
                preferred_element_type=jnp.float32)
    q_ref[...] = (q + bq_ref[...]).astype(q_ref.dtype)
    kv = jnp.dot(x, wkv_ref[...].astype(compute_dtype),
                 preferred_element_type=jnp.float32)
    kv_ref[...] = (kv + bkv_ref[...]).astype(kv_ref.dtype)


def _attn_body(q, k, v, *, compute_dtype, exact_recip):
    """Per-head attention: q/k/v are (X, d) token-major; scale is pre-folded
    into the q projection weights.  Softmax math stays f32 (v5e-safe)."""
    s = jnp.einsum("xd,yd->xy", q.astype(compute_dtype), k.astype(compute_dtype),
                   preferred_element_type=jnp.float32)
    s = s - jnp.max(s, axis=-1, keepdims=True)
    e = jnp.exp(s)
    denom = jnp.sum(e, axis=-1, keepdims=True)
    if exact_recip:
        a = e / denom
    else:
        a = e * pl.reciprocal(denom, approx=True)
    o = jnp.dot(a.astype(compute_dtype), v.astype(compute_dtype),
                preferred_element_type=jnp.float32)
    return o, a


def _patch_attn_kernel(q_ref, kv_ref, o_ref, *, d, compute_dtype):
    q = q_ref[0, 0]                       # (X, d)
    kv = kv_ref[0, 0]                     # (X, 2d); k/v sliced in VMEM
    k, v = kv[:, :d], kv[:, d:]
    o, _ = _attn_body(q, k, v, compute_dtype=compute_dtype, exact_recip=False)
    o_ref[0, 0] = o.astype(o_ref.dtype)


def _patch_attn_weights_kernel(q_ref, kv_ref, o_ref, aw_ref, *, d, inv_nh,
                               compute_dtype):
    q = q_ref[0, 0]
    kv = kv_ref[0, 0]
    k, v = kv[:, :d], kv[:, d:]
    o, a = _attn_body(q, k, v, compute_dtype=compute_dtype, exact_recip=True)
    o_ref[0, 0] = o.astype(o_ref.dtype)

    # Head-mean accumulated in-kernel over the (arbitrary) head grid axis.
    @pl.when(pl.program_id(1) == 0)
    def _():
        aw_ref[0] = jnp.zeros_like(aw_ref[0])
    aw_ref[0] += a * inv_nh


# ------------------------------ Pallas glue --------------------------------

def matmul_bias(x, w_t, b, *, out_dtype=jnp.float32, block_rows=1024,
                compute_dtype=jnp.bfloat16):
    """Row-tiled  x (M, K) @ w_t (K, N) + b (1, N)  ->  (M, N).

    K is taken as a single block (always true for CAVER's 1x1 convs).
    """
    # TODO(synk): add a K-tiled fallback with f32 scratch accumulator if K
    # ever grows past a single VMEM block (not needed for CAVER).
    M, K = x.shape
    N_out = w_t.shape[1]
    tm = min(block_rows, M)
    return pl.pallas_call(
        functools.partial(_matmul_bias_kernel, compute_dtype=compute_dtype),
        out_shape=jax.ShapeDtypeStruct((M, N_out), out_dtype),
        grid=(pl.cdiv(M, tm),),
        in_specs=[
            pl.BlockSpec((tm, K), lambda i: (i, 0)),
            pl.BlockSpec((K, N_out), lambda i: (0, 0)),
            pl.BlockSpec((1, N_out), lambda i: (0, 0)),
        ],
        out_specs=pl.BlockSpec((tm, N_out), lambda i: (i, 0)),
        compiler_params=pltpu.CompilerParams(
            dimension_semantics=("parallel",),
            vmem_limit_bytes=_VMEM_LIMIT,
        ),
    )(x, w_t, b)


def fused_qkv_projection(x_rows, wq_t, bq, wkv_t, bkv, *, block_rows=1024,
                         out_dtype=jnp.bfloat16, compute_dtype=jnp.bfloat16):
    """Self-attention case: one pass over x_rows produces q (M,C) and kv (M,2C)."""
    M, K = x_rows.shape
    Cq = wq_t.shape[1]
    Ckv = wkv_t.shape[1]
    tm = min(block_rows, M)
    return pl.pallas_call(
        functools.partial(_fused_qkv_proj_kernel, compute_dtype=compute_dtype),
        out_shape=(jax.ShapeDtypeStruct((M, Cq), out_dtype),
                   jax.ShapeDtypeStruct((M, Ckv), out_dtype)),
        grid=(pl.cdiv(M, tm),),
        in_specs=[
            pl.BlockSpec((tm, K), lambda i: (i, 0)),
            pl.BlockSpec((K, Cq), lambda i: (0, 0)),
            pl.BlockSpec((1, Cq), lambda i: (0, 0)),
            pl.BlockSpec((K, Ckv), lambda i: (0, 0)),
            pl.BlockSpec((1, Ckv), lambda i: (0, 0)),
        ],
        out_specs=(pl.BlockSpec((tm, Cq), lambda i: (i, 0)),
                   pl.BlockSpec((tm, Ckv), lambda i: (i, 0))),
        compiler_params=pltpu.CompilerParams(
            dimension_semantics=("parallel",),
            vmem_limit_bytes=_VMEM_LIMIT,
        ),
    )(x_rows, wq_t, bq, wkv_t, bkv)


def patch_attention(qe, kve, *, need_weights, compute_dtype=jnp.bfloat16,
                    out_dtype=jnp.bfloat16):
    """qe: (N, nh, X, d) token-major, kve: (N, nh, X, 2d) with [k | v] on the
    last dim.  Grid = (batch, head)."""
    N, nh, X, d = qe.shape
    q_spec = pl.BlockSpec((1, 1, X, d), lambda b, h: (b, h, 0, 0))
    kv_spec = pl.BlockSpec((1, 1, X, 2 * d), lambda b, h: (b, h, 0, 0))
    o_spec = pl.BlockSpec((1, 1, X, d), lambda b, h: (b, h, 0, 0))

    if need_weights:
        out, aw = pl.pallas_call(
            functools.partial(_patch_attn_weights_kernel, d=d, inv_nh=1.0 / nh,
                              compute_dtype=compute_dtype),
            out_shape=(jax.ShapeDtypeStruct((N, nh, X, d), out_dtype),
                       jax.ShapeDtypeStruct((N, X, X), jnp.float32)),
            grid=(N, nh),
            in_specs=[q_spec, kv_spec],
            out_specs=(o_spec,
                       pl.BlockSpec((1, X, X), lambda b, h: (b, 0, 0))),
            compiler_params=pltpu.CompilerParams(
                dimension_semantics=("parallel", "arbitrary"),
                vmem_limit_bytes=_VMEM_LIMIT,
            ),
        )(qe, kve)
        return out, aw

    out = pl.pallas_call(
        functools.partial(_patch_attn_kernel, d=d, compute_dtype=compute_dtype),
        out_shape=jax.ShapeDtypeStruct((N, nh, X, d), out_dtype),
        grid=(N, nh),
        in_specs=[q_spec, kv_spec],
        out_specs=o_spec,
        compiler_params=pltpu.CompilerParams(
            dimension_semantics=("parallel", "parallel"),
            vmem_limit_bytes=_VMEM_LIMIT,
        ),
    )(qe, kve)
    return out, None


# ----------------------- layout helpers (XLA-side) --------------------------

def _encode_q(rows, N, H, W, C, nh, p):
    """NHWC rows (N*H*W, C) -> token-major (N, nh, X, d); X=(nhp,nwp),
    d=(hd,ph,pw) -- same ordering as PatchwiseTokenReEmbedding.encode."""
    hd, nhp, nwp = C // nh, H // p, W // p
    x = rows.reshape(N, nhp, p, nwp, p, nh, hd)
    x = jnp.transpose(x, (0, 5, 1, 3, 6, 2, 4))   # (N, nh, nhp, nwp, hd, ph, pw)
    return x.reshape(N, nh, nhp * nwp, hd * p * p)


def _encode_kv(rows, N, H, W, C, nh, p):
    """NHWC rows (N*H*W, 2C) with channels [k | v] -> (N, nh, X, 2d) with the
    last dim ordered [k_d | v_d]; encoded once, sliced inside the kernel."""
    hd, nhp, nwp = C // nh, H // p, W // p
    x = rows.reshape(N, nhp, p, nwp, p, 2, nh, hd)
    x = jnp.transpose(x, (0, 6, 1, 3, 5, 7, 2, 4))  # (N, nh, nhp, nwp, 2, hd, ph, pw)
    return x.reshape(N, nh, nhp * nwp, 2 * hd * p * p)


def _decode_to_rows(x, N, H, W, C, nh, p):
    """Token-major (N, nh, X, d) -> NHWC rows (N*H*W, C)."""
    hd, nhp, nwp = C // nh, H // p, W // p
    x = x.reshape(N, nh, nhp, nwp, hd, p, p)
    x = jnp.transpose(x, (0, 2, 5, 3, 6, 1, 4))   # (N, nhp, ph, nwp, pw, nh, hd)
    return x.reshape(N * H * W, C)


# --------------------------- module entry point ------------------------------

def prepare_params(params, *, p, nh):
    """One-time parameter prep: fold the attention scale into (wq, bq),
    transpose all 1x1-conv weights to (C_in, C_out) and cast them to bf16."""
    dim = params["wq"].shape[0]
    scale = float((dim // nh * p * p) ** (-0.5))
    return {
        "wq_t": (scale * params["wq"]).T.astype(jnp.bfloat16),
        "bq": (scale * params["bq"]).reshape(1, -1).astype(jnp.float32),
        "wkv_t": params["wkv"].T.astype(jnp.bfloat16),
        "bkv": params["bkv"].reshape(1, -1).astype(jnp.float32),
        "wp_t": params["wp"].T.astype(jnp.bfloat16),
        "bp": params["bp"].reshape(1, -1).astype(jnp.float32),
    }


def spatial_view_attn(prepared, q, kv=None, need_weights=False, *, p, nh,
                      block_rows=1024):
    """SpatialViewAttn.forward.  q/kv are NCHW f32; `prepared` comes from
    prepare_params()."""
    if kv is None:
        kv = q
    N, C, H, W = q.shape
    M = N * H * W

    # Single NCHW -> channels-last layout change; everything below stays
    # channels-last, so each 1x1 conv is a plain row matmul.
    q_rows = jnp.transpose(q, (0, 2, 3, 1)).reshape(M, C)

    if kv is q:
        q_proj, kv_proj = fused_qkv_projection(
            q_rows, prepared["wq_t"], prepared["bq"],
            prepared["wkv_t"], prepared["bkv"], block_rows=block_rows)
    else:
        kv_rows = jnp.transpose(kv, (0, 2, 3, 1)).reshape(M, C)
        q_proj = matmul_bias(q_rows, prepared["wq_t"], prepared["bq"],
                             out_dtype=jnp.bfloat16, block_rows=block_rows)
        kv_proj = matmul_bias(kv_rows, prepared["wkv_t"], prepared["bkv"],
                              out_dtype=jnp.bfloat16, block_rows=block_rows)

    qe = _encode_q(q_proj, N, H, W, C, nh, p)
    kve = _encode_kv(kv_proj, N, H, W, C, nh, p)

    out, aw = patch_attention(qe, kve, need_weights=need_weights)

    dec_rows = _decode_to_rows(out, N, H, W, C, nh, p)
    y_rows = matmul_bias(dec_rows, prepared["wp_t"], prepared["bp"],
                         out_dtype=jnp.float32, block_rows=block_rows)
    y = jnp.transpose(y_rows.reshape(N, H, W, C), (0, 3, 1, 2))
    if need_weights:
        return y, aw
    return y


# --------------------------- Pure-JAX reference -----------------------------

def patch_encode_nchw(x, nh, ph, pw):
    N, C, H, W = x.shape
    hd, nhp, nwp = C // nh, H // ph, W // pw
    x = x.reshape(N, nh, hd, nhp, ph, nwp, pw)
    x = jnp.transpose(x, (0, 1, 2, 4, 6, 3, 5))
    return x.reshape(N, nh, hd * ph * pw, nhp * nwp)


def patch_decode_nchw(x, nhp, ph, pw):
    N, nh, d, X = x.shape
    hd, nwp = d // (ph * pw), X // nhp
    x = x.reshape(N, nh, hd, ph, pw, nhp, nwp)
    x = jnp.transpose(x, (0, 1, 2, 5, 3, 6, 4))
    return x.reshape(N, nh * hd, nhp * ph, nwp * pw)


def reference(params, q, kv=None, *, p, nh, return_weights=False):
    if kv is None:
        kv = q
    N, C, H, W = q.shape
    scale = (C // nh * p * p) ** (-0.5)

    def conv1x1(x, w, b):
        return jnp.einsum("nchw,oc->nohw", x, w) + b[None, :, None, None]

    qp = conv1x1(q, params["wq"], params["bq"])
    kvp = conv1x1(kv, params["wkv"], params["bkv"])
    k, v = kvp[:, :C], kvp[:, C:]
    qe = patch_encode_nchw(qp, nh, p, p)
    ke = patch_encode_nchw(k, nh, p, p)
    ve = patch_encode_nchw(v, nh, p, p)
    qk = jnp.einsum("bndx,bndy->bnxy", qe, ke) * scale
    attn = jax.nn.softmax(qk, axis=-1)
    qkv = jnp.einsum("bnxy,bndy->bndx", attn, ve)
    dec = patch_decode_nchw(qkv, nhp=H // p, ph=p, pw=p)
    y = conv1x1(dec, params["wp"], params["bp"])
    if return_weights:
        return y, jnp.mean(attn, axis=1)
    return y


# --------------------------------- Main -------------------------------------

if __name__ == "__main__":
    # Small shapes: N=2, dim=8, H=W=16, p=2, nh=2
    # -> head dim hd=4, token dim d=hd*p*p=16, tokens X=(16/2)^2=64,
    #    conv rows M=N*H*W=512.
    N, dim, H, W = 2, 8, 16, 16
    p, nh = 2, 2

    key = jax.random.PRNGKey(0)
    kx, kx2, k1, k2, k3, k4, k5, k6 = jax.random.split(key, 8)

    x = jax.random.normal(kx, (N, dim, H, W), dtype=jnp.float32)
    x_kv = jax.random.normal(kx2, (N, dim, H, W), dtype=jnp.float32)

    # Deterministic synthetic parameters (Conv2d 1x1 weights as (C_out, C_in)).
    params = {
        "wq": 0.1 * jax.random.normal(k1, (dim, dim), dtype=jnp.float32),
        "bq": 0.05 * jax.random.normal(k2, (dim,), dtype=jnp.float32),
        "wkv": 0.1 * jax.random.normal(k3, (2 * dim, dim), dtype=jnp.float32),
        "bkv": 0.05 * jax.random.normal(k4, (2 * dim,), dtype=jnp.float32),
        "wp": 0.1 * jax.random.normal(k5, (dim, dim), dtype=jnp.float32),
        "bp": 0.05 * jax.random.normal(k6, (dim,), dtype=jnp.float32),
    }
    prepared = prepare_params(params, p=p, nh=nh)

    # Self-attention path (fused q/kv projection).
    out = spatial_view_attn(prepared, x, p=p, nh=nh)
    out = jax.block_until_ready(out)
    ref = jax.block_until_ready(reference(params, x, p=p, nh=nh))
    assert out.shape == (N, dim, H, W)
    assert jnp.allclose(out, ref, rtol=3e-2, atol=1e-2), "mismatch vs reference"

    # need_weights=True path (returns (x, attention averaged over heads)).
    out2, w_attn = spatial_view_attn(prepared, x, need_weights=True, p=p, nh=nh)
    jax.block_until_ready((out2, w_attn))
    ref2, ref_w = reference(params, x, p=p, nh=nh, return_weights=True)
    X_tok = (H // p) * (W // p)
    assert w_attn.shape == (N, X_tok, X_tok)
    assert jnp.allclose(out2, ref2, rtol=3e-2, atol=1e-2), "mismatch (weights path)"
    assert jnp.allclose(w_attn, ref_w, rtol=1e-2, atol=1e-3), "attn weights mismatch"

    # Cross-attention path (kv != q, unfused projections).
    out3 = jax.block_until_ready(spatial_view_attn(prepared, x, x_kv, p=p, nh=nh))
    ref3 = jax.block_until_ready(reference(params, x, x_kv, p=p, nh=nh))
    assert jnp.allclose(out3, ref3, rtol=3e-2, atol=1e-2), "mismatch (cross path)"

    print("KERNEL_OK")
</pallas_src>

<mosaic_0001>
module attributes {stable_mosaic.version = 11 : i64} {
  func.func @_fused_qkv_proj_kernel(%arg0: i32, %arg1: memref<512x8xf32, #tpu.memory_space<vmem>>, %arg2: memref<8x8xbf16, #tpu.memory_space<vmem>>, %arg3: memref<1x8xf32, #tpu.memory_space<vmem>>, %arg4: memref<8x16xbf16, #tpu.memory_space<vmem>>, %arg5: memref<1x16xf32, #tpu.memory_space<vmem>>, %arg6: memref<512x8xbf16, #tpu.memory_space<vmem>>, %arg7: memref<512x16xbf16, #tpu.memory_space<vmem>>) attributes {dimension_semantics = [#tpu.dimension_semantics<parallel>], iteration_bounds = array<i64: 1>, scalar_prefetch = 0 : i64, scratch_operands = 0 : i64, tpu.core_type = #tpu.core_type<tc>, window_params = [{transform_indices = @transform_0, window_bounds = array<i64: 512, 8>}, {pipeline_mode = #tpu.pipeline_mode<synchronous>, transform_indices = @transform_1, window_bounds = array<i64: 8, 8>}, {pipeline_mode = #tpu.pipeline_mode<synchronous>, transform_indices = @transform_2, window_bounds = array<i64: 1, 8>}, {pipeline_mode = #tpu.pipeline_mode<synchronous>, transform_indices = @transform_3, window_bounds = array<i64: 8, 16>}, {pipeline_mode = #tpu.pipeline_mode<synchronous>, transform_indices = @transform_4, window_bounds = array<i64: 1, 16>}, {transform_indices = @transform_5, window_bounds = array<i64: 512, 8>}, {transform_indices = @transform_6, window_bounds = array<i64: 512, 16>}]} {
    %c0 = arith.constant 0 : index
    %c0_0 = arith.constant 0 : index
    %0 = vector.load %arg1[%c0, %c0_0] : memref<512x8xf32, #tpu.memory_space<vmem>>, vector<512x8xf32>
    %1 = arith.truncf %0 : vector<512x8xf32> to vector<512x8xbf16>
    %c0_1 = arith.constant 0 : index
    %c0_2 = arith.constant 0 : index
    %2 = vector.load %arg2[%c0_1, %c0_2] : memref<8x8xbf16, #tpu.memory_space<vmem>>, vector<8x8xbf16>
    %cst = arith.constant dense<0.000000e+00> : vector<512x8xf32>
    %3 = tpu.matmul %1, %2, %cst {dimension_numbers = #tpu.dot_dimension_numbers<[1], [0], [0], [1], [0, 0, 1, 1], [], []>} : vector<512x8xbf16>, vector<8x8xbf16>, vector<512x8xf32> -> vector<512x8xf32>
    %c0_3 = arith.constant 0 : index
    %c0_4 = arith.constant 0 : index
    %4 = vector.load %arg3[%c0_3, %c0_4] : memref<1x8xf32, #tpu.memory_space<vmem>>, vector<1x8xf32>
    %5 = vector.broadcast %4 : vector<1x8xf32> to vector<512x8xf32>
    %6 = arith.addf %3, %5 : vector<512x8xf32>
    %7 = arith.truncf %6 : vector<512x8xf32> to vector<512x8xbf16>
    %c0_5 = arith.constant 0 : index
    %c0_6 = arith.constant 0 : index
    %8 = vector.load %arg6[%c0_5, %c0_6] : memref<512x8xbf16, #tpu.memory_space<vmem>>, vector<512x8xbf16>
    tpu.vector_store %arg6[%c0_5, %c0_6], %7 {strides = array<i32>} : memref<512x8xbf16, #tpu.memory_space<vmem>>, vector<512x8xbf16>,
    %c0_7 = arith.constant 0 : index
    %c0_8 = arith.constant 0 : index
    %9 = vector.load %arg4[%c0_7, %c0_8] : memref<8x16xbf16, #tpu.memory_space<vmem>>, vector<8x16xbf16>
    %cst_9 = arith.constant dense<0.000000e+00> : vector<512x16xf32>
    %10 = tpu.matmul %1, %9, %cst_9 {dimension_numbers = #tpu.dot_dimension_numbers<[1], [0], [0], [1], [0, 0, 1, 1], [], []>} : vector<512x8xbf16>, vector<8x16xbf16>, vector<512x16xf32> -> vector<512x16xf32>
    %c0_10 = arith.constant 0 : index
    %c0_11 = arith.constant 0 : index
    %11 = vector.load %arg5[%c0_10, %c0_11] : memref<1x16xf32, #tpu.memory_space<vmem>>, vector<1x16xf32>
    %12 = vector.broadcast %11 : vector<1x16xf32> to vector<512x16xf32>
    %13 = arith.addf %10, %12 : vector<512x16xf32>
    %14 = arith.truncf %13 : vector<512x16xf32> to vector<512x16xbf16>
    %c0_12 = arith.constant 0 : index
    %c0_13 = arith.constant 0 : index
    %15 = vector.load %arg7[%c0_12, %c0_13] : memref<512x16xbf16, #tpu.memory_space<vmem>>, vector<512x16xbf16>
    tpu.vector_store %arg7[%c0_12, %c0_13], %14 {strides = array<i32>} : memref<512x16xbf16, #tpu.memory_space<vmem>>, vector<512x16xbf16>,
    return
  }
  func.func @transform_0(%arg0: i32) -> (i32, i32) {
    %c0_i32 = arith.constant 0 : i32
    %c0_i32_0 = arith.constant 0 : i32
    return %arg0, %c0_i32 : i32, i32
  }
  func.func @transform_1(%arg0: i32) -> (i32, i32) {
    %c0_i32 = arith.constant 0 : i32
    %c0_i32_0 = arith.constant 0 : i32
    %c0_i32_1 = arith.constant 0 : i32
    return %c0_i32, %c0_i32_0 : i32, i32
  }
  func.func @transform_2(%arg0: i32) -> (i32, i32) {
    %c0_i32 = arith.constant 0 : i32
    %c0_i32_0 = arith.constant 0 : i32
    %c0_i32_1 = arith.constant 0 : i32
    return %c0_i32, %c0_i32_0 : i32, i32
  }
  func.func @transform_3(%arg0: i32) -> (i32, i32) {
    %c0_i32 = arith.constant 0 : i32
    %c0_i32_0 = arith.constant 0 : i32
    %c0_i32_1 = arith.constant 0 : i32
    return %c0_i32, %c0_i32_0 : i32, i32
  }
  func.func @transform_4(%arg0: i32) -> (i32, i32) {
    %c0_i32 = arith.constant 0 : i32
    %c0_i32_0 = arith.constant 0 : i32
    %c0_i32_1 = arith.constant 0 : i32
    return %c0_i32, %c0_i32_0 : i32, i32
  }
  func.func @transform_5(%arg0: i32) -> (i32, i32) {
    %c0_i32 = arith.constant 0 : i32
    %c0_i32_0 = arith.constant 0 : i32
    return %arg0, %c0_i32 : i32, i32
  }
  func.func @transform_6(%arg0: i32) -> (i32, i32) {
    %c0_i32 = arith.constant 0 : i32
    %c0_i32_0 = arith.constant 0 : i32
    return %arg0, %c0_i32 : i32, i32
  }
}

</mosaic_0001>

<llo_original>
// kernel: tpu_custom_call.1
$region0: #{tpu_custom_call.1}
  #allocation0 [shape = 'u32[]', space=smem, size = 0x4, offset = 0x4, fixed_abs, tag = 'smem constant byte address 0x4 - core index']
  #allocation1 [shape = 'u32[144,128]{1,0:T(1,128)}', space=vmem, size = 0x12000, scoped, tag = 'internal scratch']
  %s0 = inlined_call_operand.vmem [shape: f32[512,8], index: 0, kind: input, shape index: {}]
  %s1 = inlined_call_operand.vmem [shape: bf16[8,8], index: 1, kind: input, shape index: {}]
  %s2 = inlined_call_operand.vmem [shape: f32[1,8], index: 2, kind: input, shape index: {}]
  %s3 = inlined_call_operand.vmem [shape: bf16[8,16], index: 3, kind: input, shape index: {}]
  %s4 = inlined_call_operand.vmem [shape: f32[1,16], index: 4, kind: input, shape index: {}]
  %s5 = inlined_call_operand.vmem [shape: bf16[512,8], index: 5, kind: output, shape index: {0}]
  %s6 = inlined_call_operand.vmem [shape: bf16[512,16], index: 6, kind: output, shape index: {1}]
  %7 = xla_tuple %s5, %s6
  %s8 = sld [smem:[#allocation0]]
  $region38: #{tpu_custom_call.1} parent=0
    _
  %s10 = ssub.s32 1, %s8
  %s11 = scalar_select 0, %s10, %s8
  // Predicated region
  $region2: #{tpu_custom_call.1} parent=0 // pred_check
    _
  $region3: #{tpu_custom_call.1} parent=0 // pred_check_branch
    %13 = sbr.rel (0) target = $region5
  $region4: #{tpu_custom_call.1} parent=0 // pred_region
    _
  $region5: #{tpu_custom_call.1} parent=0 // pred_fallthru
    _
  // Predicated region
  $region6: #{tpu_custom_call.1} parent=0 // pred_check
    _
  $region7: #{tpu_custom_call.1} parent=0 // pred_check_branch
    %15 = sbr.rel (0) target = $region9
  $region8: #{tpu_custom_call.1} parent=0 // pred_region
    _
  $region9: #{tpu_custom_call.1} parent=0 // pred_fallthru
    _
  // Predicated region
  $region10: #{tpu_custom_call.1} parent=0 // pred_check
    _
  $region11: #{tpu_custom_call.1} parent=0 // pred_check_branch
    %17 = sbr.rel (0) target = $region13
  $region12: #{tpu_custom_call.1} parent=0 // pred_region
    _
  $region13: #{tpu_custom_call.1} parent=0 // pred_fallthru
    _
  // Predicated region
  $region14: #{tpu_custom_call.1} parent=0 // pred_check
    _
  $region15: #{tpu_custom_call.1} parent=0 // pred_check_branch
    %19 = sbr.rel (0) target = $region17
  $region16: #{tpu_custom_call.1} parent=0 // pred_region
    _
  $region17: #{tpu_custom_call.1} parent=0 // pred_fallthru
    _
  // Predicated region
  $region18: #{tpu_custom_call.1} parent=0 // pred_check
    _
  $region19: #{tpu_custom_call.1} parent=0 // pred_check_branch
    %21 = sbr.rel (0) target = $region21
  $region20: #{tpu_custom_call.1} parent=0 // pred_region
    _
  $region21: #{tpu_custom_call.1} parent=0 // pred_fallthru
    _
  %v23 = vld [vmem:[%s0] sm:$0xff]
  %v24 = vld [vmem:[%s0 + $0x8] sm:$0xff]
  %v25 = vld [vmem:[%s0 + $0x10] sm:$0xff]
  %v26 = vld [vmem:[%s0 + $0x18] sm:$0xff]
  %v27 = vld [vmem:[%s0 + $0x20] sm:$0xff]
  %v28 = vld [vmem:[%s0 + $0x28] sm:$0xff]
  %v29 = vld [vmem:[%s0 + $0x30] sm:$0xff]
  %v30 = vld [vmem:[%s0 + $0x38] sm:$0xff]
  %v31 = vld [vmem:[%s0 + $0x40] sm:$0xff]
  %v32 = vld [vmem:[%s0 + $0x48] sm:$0xff]
  %v33 = vld [vmem:[%s0 + $0x50] sm:$0xff]
  %v34 = vld [vmem:[%s0 + $0x58] sm:$0xff]
  %v35 = vld [vmem:[%s0 + $0x60] sm:$0xff]
  %v36 = vld [vmem:[%s0 + $0x68] sm:$0xff]
  %v37 = vld [vmem:[%s0 + $0x70] sm:$0xff]
  %v38 = vld [vmem:[%s0 + $0x78] sm:$0xff]
  %v39 = vld [vmem:[%s0 + $0x80] sm:$0xff]
  %v40 = vld [vmem:[%s0 + $0x88] sm:$0xff]
  %v41 = vld [vmem:[%s0 + $0x90] sm:$0xff]
  %v42 = vld [vmem:[%s0 + $0x98] sm:$0xff]
  %v43 = vld [vmem:[%s0 + $0xa0] sm:$0xff]
  %v44 = vld [vmem:[%s0 + $0xa8] sm:$0xff]
  %v45 = vld [vmem:[%s0 + $0xb0] sm:$0xff]
  %v46 = vld [vmem:[%s0 + $0xb8] sm:$0xff]
  %v47 = vld [vmem:[%s0 + $0xc0] sm:$0xff]
  %v48 = vld [vmem:[%s0 + $0xc8] sm:$0xff]
  %v49 = vld [vmem:[%s0 + $0xd0] sm:$0xff]
  %v50 = vld [vmem:[%s0 + $0xd8] sm:$0xff]
  %v51 = vld [vmem:[%s0 + $0xe0] sm:$0xff]
  %v52 = vld [vmem:[%s0 + $0xe8] sm:$0xff]
  %v53 = vld [vmem:[%s0 + $0xf0] sm:$0xff]
  %v54 = vld [vmem:[%s0 + $0xf8] sm:$0xff]
  %v55 = vld [vmem:[%s0 + $0x100] sm:$0xff]
  %v56 = vld [vmem:[%s0 + $0x108] sm:$0xff]
  %v57 = vld [vmem:[%s0 + $0x110] sm:$0xff]
  %v58 = vld [vmem:[%s0 + $0x118] sm:$0xff]
  %v59 = vld [vmem:[%s0 + $0x120] sm:$0xff]
  %v60 = vld [vmem:[%s0 + $0x128] sm:$0xff]
  %v61 = vld [vmem:[%s0 + $0x130] sm:$0xff]
  %v62 = vld [vmem:[%s0 + $0x138] sm:$0xff]
  %v63 = vld [vmem:[%s0 + $0x140] sm:$0xff]
  %v64 = vld [vmem:[%s0 + $0x148] sm:$0xff]
  %v65 = vld [vmem:[%s0 + $0x150] sm:$0xff]
  %v66 = vld [vmem:[%s0 + $0x158] sm:$0xff]
  %v67 = vld [vmem:[%s0 + $0x160] sm:$0xff]
  %v68 = vld [vmem:[%s0 + $0x168] sm:$0xff]
  %v69 = vld [vmem:[%s0 + $0x170] sm:$0xff]
  %v70 = vld [vmem:[%s0 + $0x178] sm:$0xff]
  %v71 = vld [vmem:[%s0 + $0x180] sm:$0xff]
  %v72 = vld [vmem:[%s0 + $0x188] sm:$0xff]
  %v73 = vld [vmem:[%s0 + $0x190] sm:$0xff]
  %v74 = vld [vmem:[%s0 + $0x198] sm:$0xff]
  %v75 = vld [vmem:[%s0 + $0x1a0] sm:$0xff]
  %v76 = vld [vmem:[%s0 + $0x1a8] sm:$0xff]
  %v77 = vld [vmem:[%s0 + $0x1b0] sm:$0xff]
  %v78 = vld [vmem:[%s0 + $0x1b8] sm:$0xff]
  %v79 = vld [vmem:[%s0 + $0x1c0] sm:$0xff]
  %v80 = vld [vmem:[%s0 + $0x1c8] sm:$0xff]
  %v81 = vld [vmem:[%s0 + $0x1d0] sm:$0xff]
  %v82 = vld [vmem:[%s0 + $0x1d8] sm:$0xff]
  %v83 = vld [vmem:[%s0 + $0x1e0] sm:$0xff]
  %v84 = vld [vmem:[%s0 + $0x1e8] sm:$0xff]
  %v85 = vld [vmem:[%s0 + $0x1f0] sm:$0xff]
  %v86 = vld [vmem:[%s0 + $0x1f8] sm:$0xff]
  %v87 = vpack.c.bf16 %v24, %v23
  %v88 = vpack.c.bf16 %v26, %v25
  %v89 = vpack.c.bf16 %v28, %v27
  %v90 = vpack.c.bf16 %v30, %v29
  %v91 = vpack.c.bf16 %v32, %v31
  %v92 = vpack.c.bf16 %v34, %v33
  %v93 = vpack.c.bf16 %v36, %v35
  %v94 = vpack.c.bf16 %v38, %v37
  %v95 = vpack.c.bf16 %v40, %v39
  %v96 = vpack.c.bf16 %v42, %v41
  %v97 = vpack.c.bf16 %v44, %v43
  %v98 = vpack.c.bf16 %v46, %v45
  %v99 = vpack.c.bf16 %v48, %v47
  %v100 = vpack.c.bf16 %v50, %v49
  %v101 = vpack.c.bf16 %v52, %v51
  %v102 = vpack.c.bf16 %v54, %v53
  %v103 = vpack.c.bf16 %v56, %v55
  %v104 = vpack.c.bf16 %v58, %v57
  %v105 = vpack.c.bf16 %v60, %v59
  %v106 = vpack.c.bf16 %v62, %v61
  %v107 = vpack.c.bf16 %v64, %v63
  %v108 = vpack.c.bf16 %v66, %v65
  %v109 = vpack.c.bf16 %v68, %v67
  %v110 = vpack.c.bf16 %v70, %v69
  %v111 = vpack.c.bf16 %v72, %v71
  %v112 = vpack.c.bf16 %v74, %v73
  %v113 = vpack.c.bf16 %v76, %v75
  %v114 = vpack.c.bf16 %v78, %v77
  %v115 = vpack.c.bf16 %v80, %v79
  %v116 = vpack.c.bf16 %v82, %v81
  %v117 = vpack.c.bf16 %v84, %v83
  %v118 = vpack.c.bf16 %v86, %v85
  %v119 = vld [vmem:[%s1] sm:$0xf]
  %v120 = vld [vmem:[%s2] sm:$0x1]
  %v122 = vlaneseq
  %v123 = vshrl.u32 %v122, 7
  %v124 = vsub.s32 0, %v123
  %v125 = vrot.slane %v120, %v124
  %vm127 = vcmask 64512
  %v129 = vsel %vm127, %v87, 0
  %v132 = vsel %vm127, %v88, 0
  %v135 = vsel %vm127, %v89, 0
  %v138 = vsel %vm127, %v90, 0
  %v141 = vsel %vm127, %v91, 0
  %v144 = vsel %vm127, %v92, 0
  %v147 = vsel %vm127, %v93, 0
  %v150 = vsel %vm127, %v94, 0
  %v153 = vsel %vm127, %v95, 0
  %v156 = vsel %vm127, %v96, 0
  %v159 = vsel %vm127, %v97, 0
  %v162 = vsel %vm127, %v98, 0
  %v165 = vsel %vm127, %v99, 0
  %v168 = vsel %vm127, %v100, 0
  %v171 = vsel %vm127, %v101, 0
  %v174 = vsel %vm127, %v102, 0
  %v177 = vsel %vm127, %v103, 0
  %v180 = vsel %vm127, %v104, 0
  %v183 = vsel %vm127, %v105, 0
  %v186 = vsel %vm127, %v106, 0
  %v189 = vsel %vm127, %v107, 0
  %v192 = vsel %vm127, %v108, 0
  %v195 = vsel %vm127, %v109, 0
  %v198 = vsel %vm127, %v110, 0
  %v201 = vsel %vm127, %v111, 0
  %v204 = vsel %vm127, %v112, 0
  %v207 = vsel %vm127, %v113, 0
  %v210 = vsel %vm127, %v114, 0
  %v213 = vsel %vm127, %v115, 0
  %v216 = vsel %vm127, %v116, 0
  %v219 = vsel %vm127, %v117, 0
  %v222 = vsel %vm127, %v118, 0
  %vm224 = vcmask 1043456
  %v226 = vsel %vm224, %v119, 0
  %228 = vmatprep.subr.bf16.mxu0 0
  %229 = vmatpush1.bf16.msra.mxu0 %v226
  %230 = vmatprep.subr.bf16.mxu0 0
  %231 = vmatpush1.bf16.msra.mxu0 0
  %232 = vmatprep.subr.bf16.mxu0 0
  %233 = vmatpush1.bf16.msra.mxu0 0
  %234 = vmatprep.subr.bf16.mxu0 0
  %235 = vmatpush1.bf16.msra.mxu0 0
  %236 = vmatprep.subr.bf16.mxu0 0
  %237 = vmatpush1.bf16.msra.mxu0 0
  %238 = vmatprep.subr.bf16.mxu0 0
  %239 = vmatpush1.bf16.msra.mxu0 0
  %240 = vmatprep.subr.bf16.mxu0 0
  %241 = vmatpush1.bf16.msra.mxu0 0
  %242 = vmatprep.subr.bf16.mxu0 0
  %243 = vmatpush1.bf16.msra.mxu0 0
  %244 = vmatprep.subr.bf16.mxu0 0
  %245 = vmatpush1.bf16.msra.mxu0 0
  %246 = vmatprep.subr.bf16.mxu0 0
  %247 = vmatpush1.bf16.msra.mxu0 0
  %248 = vmatprep.subr.bf16.mxu0 0
  %249 = vmatpush1.bf16.msra.mxu0 0
  %250 = vmatprep.subr.bf16.mxu0 0
  %251 = vmatpush1.bf16.msra.mxu0 0
  %252 = vmatprep.subr.bf16.mxu0 0
  %253 = vmatpush1.bf16.msra.mxu0 0
  %254 = vmatprep.subr.bf16.mxu0 0
  %255 = vmatpush1.bf16.msra.mxu0 0
  %256 = vmatprep.subr.bf16.mxu0 0
  %257 = vmatpush1.bf16.msra.mxu0 0
  %258 = vmatprep.subr.bf16.mxu0 0
  %259 = vmatpush1.bf16.msra.mxu0 0
  %260 = vmatprep.mubr.bf16.mxu0 0
  %261 = vmatmul.mubr.bf16.gmra.mrb[0].mxu0 %v129
  %v262 = vpop.f32.mrb[0].mxu0
  %v263 = vadd.f32 %v125, %v262
  %v264 = vpop.f32.mrb[0].mxu0
  %v265 = vpop.f32.mrb[0].mxu0
  %v266 = vadd.f32 %v125, %v265
  %v267 = vpop.f32.mrb[0].mxu0
  %268 = vmatprep.mubr.bf16.mxu0 0
  %269 = vmatmul.mubr.bf16.gmra.mrb[0].mxu0 %v132
  %v270 = vpop.f32.mrb[0].mxu0
  %v271 = vadd.f32 %v125, %v270
  %v272 = vpop.f32.mrb[0].mxu0
  %v273 = vpop.f32.mrb[0].mxu0
  %v274 = vadd.f32 %v125, %v273
  %v275 = vpop.f32.mrb[0].mxu0
  %276 = vmatprep.mubr.bf16.mxu0 0
  %277 = vmatmul.mubr.bf16.gmra.mrb[0].mxu0 %v135
  %v278 = vpop.f32.mrb[0].mxu0
  %v279 = vadd.f32 %v125, %v278
  %v280 = vpop.f32.mrb[0].mxu0
  %v281 = vpop.f32.mrb[0].mxu0
  %v282 = vadd.f32 %v125, %v281
  %v283 = vpop.f32.mrb[0].mxu0
  %284 = vmatprep.mubr.bf16.mxu0 0
  %285 = vmatmul.mubr.bf16.gmra.mrb[0].mxu0 %v138
  %v286 = vpop.f32.mrb[0].mxu0
  %v287 = vadd.f32 %v125, %v286
  %v288 = vpop.f32.mrb[0].mxu0
  %v289 = vpop.f32.mrb[0].mxu0
  %v290 = vadd.f32 %v125, %v289
  %v291 = vpop.f32.mrb[0].mxu0
  %292 = vmatprep.mubr.bf16.mxu0 0
  %293 = vmatmul.mubr.bf16.gmra.mrb[0].mxu0 %v141
  %v294 = vpop.f32.mrb[0].mxu0
  %v295 = vadd.f32 %v125, %v294
  %v296 = vpop.f32.mrb[0].mxu0
  %v297 = vpop.f32.mrb[0].mxu0
  %v298 = vadd.f32 %v125, %v297
  %v299 = vpop.f32.mrb[0].mxu0
  %300 = vmatprep.mubr.bf16.mxu0 0
  %301 = vmatmul.mubr.bf16.gmra.mrb[0].mxu0 %v144
  %v302 = vpop.f32.mrb[0].mxu0
  %v303 = vadd.f32 %v125, %v302
  %v304 = vpop.f32.mrb[0].mxu0
  %v305 = vpop.f32.mrb[0].mxu0
  %v306 = vadd.f32 %v125, %v305
  %v307 = vpop.f32.mrb[0].mxu0
  %308 = vmatprep.mubr.bf16.mxu0 0
  %309 = vmatmul.mubr.bf16.gmra.mrb[0].mxu0 %v147
  %v310 = vpop.f32.mrb[0].mxu0
  %v311 = vadd.f32 %v125, %v310
  %v312 = vpop.f32.mrb[0].mxu0
  %v313 = vpop.f32.mrb[0].mxu0
  %v314 = vadd.f32 %v125, %v313
  %v315 = vpop.f32.mrb[0].mxu0
  %316 = vmatprep.mubr.bf16.mxu0 0
  %317 = vmatmul.mubr.bf16.gmra.mrb[0].mxu0 %v150
  %v318 = vpop.f32.mrb[0].mxu0
  %v319 = vadd.f32 %v125, %v318
  %v320 = vpop.f32.mrb[0].mxu0
  %v321 = vpop.f32.mrb[0].mxu0
  %v322 = vadd.f32 %v125, %v321
  %v323 = vpop.f32.mrb[0].mxu0
  %324 = vmatprep.mubr.bf16.mxu0 0
  %325 = vmatmul.mubr.bf16.gmra.mrb[0].mxu0 %v153
  %v326 = vpop.f32.mrb[0].mxu0
  %v327 = vadd.f32 %v125, %v326
  %v328 = vpop.f32.mrb[0].mxu0
  %v329 = vpop.f32.mrb[0].mxu0
  %v330 = vadd.f32 %v125, %v329
  %v331 = vpop.f32.mrb[0].mxu0
  %332 = vmatprep.mubr.bf16.mxu0 0
  %333 = vmatmul.mubr.bf16.gmra.mrb[0].mxu0 %v156
  %v334 = vpop.f32.mrb[0].mxu0
  %v335 = vadd.f32 %v125, %v334
  %v336 = vpop.f32.mrb[0].mxu0
  %v337 = vpop.f32.mrb[0].mxu0
  %v338 = vadd.f32 %v125, %v337
  %v339 = vpop.f32.mrb[0].mxu0
  %340 = vmatprep.mubr.bf16.mxu0 0
  %341 = vmatmul.mubr.bf16.gmra.mrb[0].mxu0 %v159
  %v342 = vpop.f32.mrb[0].mxu0
  %v343 = vadd.f32 %v125, %v342
  %v344 = vpop.f32.mrb[0].mxu0
  %v345 = vpop.f32.mrb[0].mxu0
  %v346 = vadd.f32 %v125, %v345
  %v347 = vpop.f32.mrb[0].mxu0
  %348 = vmatprep.mubr.bf16.mxu0 0
  %349 = vmatmul.mubr.bf16.gmra.mrb[0].mxu0 %v162
  %v350 = vpop.f32.mrb[0].mxu0
  %v351 = vadd.f32 %v125, %v350
  %v352 = vpop.f32.mrb[0].mxu0
  %v353 = vpop.f32.mrb[0].mxu0
  %v354 = vadd.f32 %v125, %v353
  %v355 = vpop.f32.mrb[0].mxu0
  %356 = vmatprep.mubr.bf16.mxu0 0
  %357 = vmatmul.mubr.bf16.gmra.mrb[0].mxu0 %v165
  %v358 = vpop.f32.mrb[0].mxu0
  %v359 = vadd.f32 %v125, %v358
  %v360 = vpop.f32.mrb[0].mxu0
  %v361 = vpop.f32.mrb[0].mxu0
  %v362 = vadd.f32 %v125, %v361
  %v363 = vpop.f32.mrb[0].mxu0
  %364 = vmatprep.mubr.bf16.mxu0 0
  %365 = vmatmul.mubr.bf16.gmra.mrb[0].mxu0 %v168
  %v366 = vpop.f32.mrb[0].mxu0
  %v367 = vadd.f32 %v125, %v366
  %v368 = vpop.f32.mrb[0].mxu0
  %v369 = vpop.f32.mrb[0].mxu0
  %v370 = vadd.f32 %v125, %v369
  %v371 = vpop.f32.mrb[0].mxu0
  %372 = vmatprep.mubr.bf16.mxu0 0
  %373 = vmatmul.mubr.bf16.gmra.mrb[0].mxu0 %v171
  %v374 = vpop.f32.mrb[0].mxu0
  %v375 = vadd.f32 %v125, %v374
  %v376 = vpop.f32.mrb[0].mxu0
  %v377 = vpop.f32.mrb[0].mxu0
  %v378 = vadd.f32 %v125, %v377
  %v379 = vpop.f32.mrb[0].mxu0
  %380 = vmatprep.mubr.bf16.mxu0 0
  %381 = vmatmul.mubr.bf16.gmra.mrb[0].mxu0 %v174
  %v382 = vpop.f32.mrb[0].mxu0
  %v383 = vadd.f32 %v125, %v382
  %v384 = vpop.f32.mrb[0].mxu0
  %v385 = vpop.f32.mrb[0].mxu0
  %v386 = vadd.f32 %v125, %v385
  %v387 = vpop.f32.mrb[0].mxu0
  %388 = vmatprep.mubr.bf16.mxu0 0
  %389 = vmatmul.mubr.bf16.gmra.mrb[0].mxu0 %v177
  %v390 = vpop.f32.mrb[0].mxu0
  %v391 = vadd.f32 %v125, %v390
  %v392 = vpop.f32.mrb[0].mxu0
  %v393 = vpop.f32.mrb[0].mxu0
  %v394 = vadd.f32 %v125, %v393
  %v395 = vpop.f32.mrb[0].mxu0
  %396 = vmatprep.mubr.bf16.mxu0 0
  %397 = vmatmul.mubr.bf16.gmra.mrb[0].mxu0 %v180
  %v398 = vpop.f32.mrb[0].mxu0
  %v399 = vadd.f32 %v125, %v398
  %v400 = vpop.f32.mrb[0].mxu0
  %v401 = vpop.f32.mrb[0].mxu0
  %v402 = vadd.f32 %v125, %v401
  %v403 = vpop.f32.mrb[0].mxu0
  %404 = vmatprep.mubr.bf16.mxu0 0
  %405 = vmatmul.mubr.bf16.gmra.mrb[0].mxu0 %v183
  %v406 = vpop.f32.mrb[0].mxu0
  %v407 = vadd.f32 %v125, %v406
  %v408 = vpop.f32.mrb[0].mxu0
  %v409 = vpop.f32.mrb[0].mxu0
  %v410 = vadd.f32 %v125, %v409
  %v411 = vpop.f32.mrb[0].mxu0
  %412 = vmatprep.mubr.bf16.mxu0 0
  %413 = vmatmul.mubr.bf16.gmra.mrb[0].mxu0 %v186
  %v414 = vpop.f32.mrb[0].mxu0
  %v415 = vadd.f32 %v125, %v414
  %v416 = vpop.f32.mrb[0].mxu0
  %v417 = vpop.f32.mrb[0].mxu0
  %v418 = vadd.f32 %v125, %v417
  %v419 = vpop.f32.mrb[0].mxu0
  %420 = vmatprep.mubr.bf16.mxu0 0
  %421 = vmatmul.mubr.bf16.gmra.mrb[0].mxu0 %v189
  %v422 = vpop.f32.mrb[0].mxu0
  %v423 = vadd.f32 %v125, %v422
  %v424 = vpop.f32.mrb[0].mxu0
  %v425 = vpop.f32.mrb[0].mxu0
  %v426 = vadd.f32 %v125, %v425
  %v427 = vpop.f32.mrb[0].mxu0
  %428 = vmatprep.mubr.bf16.mxu0 0
  %429 = vmatmul.mubr.bf16.gmra.mrb[0].mxu0 %v192
  %v430 = vpop.f32.mrb[0].mxu0
  %v431 = vadd.f32 %v125, %v430
  %v432 = vpop.f32.mrb[0].mxu0
  %v433 = vpop.f32.mrb[0].mxu0
  %v434 = vadd.f32 %v125, %v433
  %v435 = vpop.f32.mrb[0].mxu0
  %436 = vmatprep.mubr.bf16.mxu0 0
  %437 = vmatmul.mubr.bf16.gmra.mrb[0].mxu0 %v195
  %v438 = vpop.f32.mrb[0].mxu0
  %v439 = vadd.f32 %v125, %v438
  %v440 = vpop.f32.mrb[0].mxu0
  %v441 = vpop.f32.mrb[0].mxu0
  %v442 = vadd.f32 %v125, %v441
  %v443 = vpop.f32.mrb[0].mxu0
  %444 = vmatprep.mubr.bf16.mxu0 0
  %445 = vmatmul.mubr.bf16.gmra.mrb[0].mxu0 %v198
  %v446 = vpop.f32.mrb[0].mxu0
  %v447 = vadd.f32 %v125, %v446
  %v448 = vpop.f32.mrb[0].mxu0
  %v449 = vpop.f32.mrb[0].mxu0
  %v450 = vadd.f32 %v125, %v449
  %v451 = vpop.f32.mrb[0].mxu0
  %452 = vmatprep.mubr.bf16.mxu0 0
  %453 = vmatmul.mubr.bf16.gmra.mrb[0].mxu0 %v201
  %v454 = vpop.f32.mrb[0].mxu0
  %v455 = vadd.f32 %v125, %v454
  %v456 = vpop.f32.mrb[0].mxu0
  %v457 = vpop.f32.mrb[0].mxu0
  %v458 = vadd.f32 %v125, %v457
  %v459 = vpop.f32.mrb[0].mxu0
  %460 = vmatprep.mubr.bf16.mxu0 0
  %461 = vmatmul.mubr.bf16.gmra.mrb[0].mxu0 %v204
  %v462 = vpop.f32.mrb[0].mxu0
  %v463 = vadd.f32 %v125, %v462
  %v464 = vpop.f32.mrb[0].mxu0
  %v465 = vpop.f32.mrb[0].mxu0
  %v466 = vadd.f32 %v125, %v465
  %v467 = vpop.f32.mrb[0].mxu0
  %468 = vmatprep.mubr.bf16.mxu0 0
  %469 = vmatmul.mubr.bf16.gmra.mrb[0].mxu0 %v207
  %v470 = vpop.f32.mrb[0].mxu0
  %v471 = vadd.f32 %v125, %v470
  %v472 = vpop.f32.mrb[0].mxu0
  %v473 = vpop.f32.mrb[0].mxu0
  %v474 = vadd.f32 %v125, %v473
  %v475 = vpop.f32.mrb[0].mxu0
  %476 = vmatprep.mubr.bf16.mxu0 0
  %477 = vmatmul.mubr.bf16.gmra.mrb[0].mxu0 %v210
  %v478 = vpop.f32.mrb[0].mxu0
  %v479 = vadd.f32 %v125, %v478
  %v480 = vpop.f32.mrb[0].mxu0
  %v481 = vpop.f32.mrb[0].mxu0
  %v482 = vadd.f32 %v125, %v481
  %v483 = vpop.f32.mrb[0].mxu0
  %484 = vmatprep.mubr.bf16.mxu0 0
  %485 = vmatmul.mubr.bf16.gmra.mrb[0].mxu0 %v213
  %v486 = vpop.f32.mrb[0].mxu0
  %v487 = vadd.f32 %v125, %v486
  %v488 = vpop.f32.mrb[0].mxu0
  %v489 = vpop.f32.mrb[0].mxu0
  %v490 = vadd.f32 %v125, %v489
  %v491 = vpop.f32.mrb[0].mxu0
  %492 = vmatprep.mubr.bf16.mxu0 0
  %493 = vmatmul.mubr.bf16.gmra.mrb[0].mxu0 %v216
  %v494 = vpop.f32.mrb[0].mxu0
  %v495 = vadd.f32 %v125, %v494
  %v496 = vpop.f32.mrb[0].mxu0
  %v497 = vpop.f32.mrb[0].mxu0
  %v498 = vadd.f32 %v125, %v497
  %v499 = vpop.f32.mrb[0].mxu0
  %500 = vmatprep.mubr.bf16.mxu0 0
  %501 = vmatmul.mubr.bf16.gmra.mrb[0].mxu0 %v219
  %v502 = vpop.f32.mrb[0].mxu0
  %v503 = vadd.f32 %v125, %v502
  %v504 = vpop.f32.mrb[0].mxu0
  %v505 = vpop.f32.mrb[0].mxu0
  %v506 = vadd.f32 %v125, %v505
  %v507 = vpop.f32.mrb[0].mxu0
  %508 = vmatprep.mubr.bf16.mxu0 0
  %509 = vmatmul.mubr.bf16.gmra.mrb[0].mxu0 %v222
  %v510 = vpop.f32.mrb[0].mxu0
  %v511 = vadd.f32 %v125, %v510
  %v512 = vpop.f32.mrb[0].mxu0
  %v513 = vpop.f32.mrb[0].mxu0
  %v514 = vadd.f32 %v125, %v513
  %v515 = vpop.f32.mrb[0].mxu0
  %516 = vdwg.mxu0
  %v517 = vpack.c.bf16 %v266, %v263
  %v518 = vpack.c.bf16 %v274, %v271
  %v519 = vpack.c.bf16 %v282, %v279
  %v520 = vpack.c.bf16 %v290, %v287
  %v521 = vpack.c.bf16 %v298, %v295
  %v522 = vpack.c.bf16 %v306, %v303
  %v523 = vpack.c.bf16 %v314, %v311
  %v524 = vpack.c.bf16 %v322, %v319
  %v525 = vpack.c.bf16 %v330, %v327
  %v526 = vpack.c.bf16 %v338, %v335
  %v527 = vpack.c.bf16 %v346, %v343
  %v528 = vpack.c.bf16 %v354, %v351
  %v529 = vpack.c.bf16 %v362, %v359
  %v530 = vpack.c.bf16 %v370, %v367
  %v531 = vpack.c.bf16 %v378, %v375
  %v532 = vpack.c.bf16 %v386, %v383
  %v533 = vpack.c.bf16 %v394, %v391
  %v534 = vpack.c.bf16 %v402, %v399
  %v535 = vpack.c.bf16 %v410, %v407
  %v536 = vpack.c.bf16 %v418, %v415
  %v537 = vpack.c.bf16 %v426, %v423
  %v538 = vpack.c.bf16 %v434, %v431
  %v539 = vpack.c.bf16 %v442, %v439
  %v540 = vpack.c.bf16 %v450, %v447
  %v541 = vpack.c.bf16 %v458, %v455
  %v542 = vpack.c.bf16 %v466, %v463
  %v543 = vpack.c.bf16 %v474, %v471
  %v544 = vpack.c.bf16 %v482, %v479
  %v545 = vpack.c.bf16 %v490, %v487
  %v546 = vpack.c.bf16 %v498, %v495
  %v547 = vpack.c.bf16 %v506, %v503
  %v548 = vpack.c.bf16 %v514, %v511
  %v581 = vunpack.c.l.b16 %v517
  %v582 = vunpack.c.h.b16 %v517
  %v583 = vunpack.c.l.b16 %v518
  %v584 = vunpack.c.h.b16 %v518
  %v585 = vunpack.c.l.b16 %v519
  %v586 = vunpack.c.h.b16 %v519
  %v587 = vunpack.c.l.b16 %v520
  %v588 = vunpack.c.h.b16 %v520
  %v589 = vunpack.c.l.b16 %v521
  %v590 = vunpack.c.h.b16 %v521
  %v591 = vunpack.c.l.b16 %v522
  %v592 = vunpack.c.h.b16 %v522
  %v593 = vunpack.c.l.b16 %v523
  %v594 = vunpack.c.h.b16 %v523
  %v595 = vunpack.c.l.b16 %v524
  %v596 = vunpack.c.h.b16 %v524
  %v597 = vunpack.c.l.b16 %v525
  %v598 = vunpack.c.h.b16 %v525
  %v599 = vunpack.c.l.b16 %v526
  %v600 = vunpack.c.h.b16 %v526
  %v601 = vunpack.c.l.b16 %v527
  %v602 = vunpack.c.h.b16 %v527
  %v603 = vunpack.c.l.b16 %v528
  %v604 = vunpack.c.h.b16 %v528
  %v605 = vunpack.c.l.b16 %v529
  %v606 = vunpack.c.h.b16 %v529
  %v607 = vunpack.c.l.b16 %v530
  %v608 = vunpack.c.h.b16 %v530
  %v609 = vunpack.c.l.b16 %v531
  %v610 = vunpack.c.h.b16 %v531
  %v611 = vunpack.c.l.b16 %v532
  %v612 = vunpack.c.h.b16 %v532
  %v613 = vunpack.c.l.b16 %v533
  %v614 = vunpack.c.h.b16 %v533
  %v615 = vunpack.c.l.b16 %v534
  %v616 = vunpack.c.h.b16 %v534
  %v617 = vunpack.c.l.b16 %v535
  %v618 = vunpack.c.h.b16 %v535
  %v619 = vunpack.c.l.b16 %v536
  %v620 = vunpack.c.h.b16 %v536
  %v621 = vunpack.c.l.b16 %v537
  %v622 = vunpack.c.h.b16 %v537
  %v623 = vunpack.c.l.b16 %v538
  %v624 = vunpack.c.h.b16 %v538
  %v625 = vunpack.c.l.b16 %v539
  %v626 = vunpack.c.h.b16 %v539
  %v627 = vunpack.c.l.b16 %v540
  %v628 = vunpack.c.h.b16 %v540
  %v629 = vunpack.c.l.b16 %v541
  %v630 = vunpack.c.h.b16 %v541
  %v631 = vunpack.c.l.b16 %v542
  %v632 = vunpack.c.h.b16 %v542
  %v633 = vunpack.c.l.b16 %v543
  %v634 = vunpack.c.h.b16 %v543
  %v635 = vunpack.c.l.b16 %v544
  %v636 = vunpack.c.h.b16 %v544
  %v637 = vunpack.c.l.b16 %v545
  %v638 = vunpack.c.h.b16 %v545
  %v639 = vunpack.c.l.b16 %v546
  %v640 = vunpack.c.h.b16 %v546
  %v641 = vunpack.c.l.b16 %v547
  %v642 = vunpack.c.h.b16 %v547
  %v643 = vunpack.c.l.b16 %v548
  %v644 = vunpack.c.h.b16 %v548
  %v645 = vpack.c.b16 %v581, %v581
  %v646 = vpack.c.b16 %v582, %v582
  %v647 = vpack.c.b16 %v583, %v583
  %v648 = vpack.c.b16 %v584, %v584
  %v649 = vpack.c.b16 %v585, %v585
  %v650 = vpack.c.b16 %v586, %v586
  %v651 = vpack.c.b16 %v587, %v587
  %v652 = vpack.c.b16 %v588, %v588
  %v653 = vpack.c.b16 %v589, %v589
  %v654 = vpack.c.b16 %v590, %v590
  %v655 = vpack.c.b16 %v591, %v591
  %v656 = vpack.c.b16 %v592, %v592
  %v657 = vpack.c.b16 %v593, %v593
  %v658 = vpack.c.b16 %v594, %v594
  %v659 = vpack.c.b16 %v595, %v595
  %v660 = vpack.c.b16 %v596, %v596
  %v661 = vpack.c.b16 %v597, %v597
  %v662 = vpack.c.b16 %v598, %v598
  %v663 = vpack.c.b16 %v599, %v599
  %v664 = vpack.c.b16 %v600, %v600
  %v665 = vpack.c.b16 %v601, %v601
  %v666 = vpack.c.b16 %v602, %v602
  %v667 = vpack.c.b16 %v603, %v603
  %v668 = vpack.c.b16 %v604, %v604
  %v669 = vpack.c.b16 %v605, %v605
  %v670 = vpack.c.b16 %v606, %v606
  %v671 = vpack.c.b16 %v607, %v607
  %v672 = vpack.c.b16 %v608, %v608
  %v673 = vpack.c.b16 %v609, %v609
  %v674 = vpack.c.b16 %v610, %v610
  %v675 = vpack.c.b16 %v611, %v611
  %v676 = vpack.c.b16 %v612, %v612
  %v677 = vpack.c.b16 %v613, %v613
  %v678 = vpack.c.b16 %v614, %v614
  %v679 = vpack.c.b16 %v615, %v615
  %v680 = vpack.c.b16 %v616, %v616
  %v681 = vpack.c.b16 %v617, %v617
  %v682 = vpack.c.b16 %v618, %v618
  %v683 = vpack.c.b16 %v619, %v619
  %v684 = vpack.c.b16 %v620, %v620
  %v685 = vpack.c.b16 %v621, %v621
  %v686 = vpack.c.b16 %v622, %v622
  %v687 = vpack.c.b16 %v623, %v623
  %v688 = vpack.c.b16 %v624, %v624
  %v689 = vpack.c.b16 %v625, %v625
  %v690 = vpack.c.b16 %v626, %v626
  %v691 = vpack.c.b16 %v627, %v627
  %v692 = vpack.c.b16 %v628, %v628
  %v693 = vpack.c.b16 %v629, %v629
  %v694 = vpack.c.b16 %v630, %v630
  %v695 = vpack.c.b16 %v631, %v631
  %v696 = vpack.c.b16 %v632, %v632
  %v697 = vpack.c.b16 %v633, %v633
  %v698 = vpack.c.b16 %v634, %v634
  %v699 = vpack.c.b16 %v635, %v635
  %v700 = vpack.c.b16 %v636, %v636
  %v701 = vpack.c.b16 %v637, %v637
  %v702 = vpack.c.b16 %v638, %v638
  %v703 = vpack.c.b16 %v639, %v639
  %v704 = vpack.c.b16 %v640, %v640
  %v705 = vpack.c.b16 %v641, %v641
  %v706 = vpack.c.b16 %v642, %v642
  %v707 = vpack.c.b16 %v643, %v643
  %v708 = vpack.c.b16 %v644, %v644
  %vm773 = vcmask 60416
  %774 = vst.msk [vmem:[%s5] sm:$0xf] %vm773, %v645
  %775 = vst.msk [vmem:[%s5 + $0x4] sm:$0xf] %vm773, %v646
  %776 = vst.msk [vmem:[%s5 + $0x8] sm:$0xf] %vm773, %v647
  %777 = vst.msk [vmem:[%s5 + $0xc] sm:$0xf] %vm773, %v648
  %778 = vst.msk [vmem:[%s5 + $0x10] sm:$0xf] %vm773, %v649
  %779 = vst.msk [vmem:[%s5 + $0x14] sm:$0xf] %vm773, %v650
  %780 = vst.msk [vmem:[%s5 + $0x18] sm:$0xf] %vm773, %v651
  %781 = vst.msk [vmem:[%s5 + $0x1c] sm:$0xf] %vm773, %v652
  %782 = vst.msk [vmem:[%s5 + $0x20] sm:$0xf] %vm773, %v653
  %783 = vst.msk [vmem:[%s5 + $0x24] sm:$0xf] %vm773, %v654
  %784 = vst.msk [vmem:[%s5 + $0x28] sm:$0xf] %vm773, %v655
  %785 = vst.msk [vmem:[%s5 + $0x2c] sm:$0xf] %vm773, %v656
  %786 = vst.msk [vmem:[%s5 + $0x30] sm:$0xf] %vm773, %v657
  %787 = vst.msk [vmem:[%s5 + $0x34] sm:$0xf] %vm773, %v658
  %788 = vst.msk [vmem:[%s5 + $0x38] sm:$0xf] %vm773, %v659
  %789 = vst.msk [vmem:[%s5 + $0x3c] sm:$0xf] %vm773, %v660
  %790 = vst.msk [vmem:[%s5 + $0x40] sm:$0xf] %vm773, %v661
  %791 = vst.msk [vmem:[%s5 + $0x44] sm:$0xf] %vm773, %v662
  %792 = vst.msk [vmem:[%s5 + $0x48] sm:$0xf] %vm773, %v663
  %793 = vst.msk [vmem:[%s5 + $0x4c] sm:$0xf] %vm773, %v664
  %794 = vst.msk [vmem:[%s5 + $0x50] sm:$0xf] %vm773, %v665
  %795 = vst.msk [vmem:[%s5 + $0x54] sm:$0xf] %vm773, %v666
  %796 = vst.msk [vmem:[%s5 + $0x58] sm:$0xf] %vm773, %v667
  %797 = vst.msk [vmem:[%s5 + $0x5c] sm:$0xf] %vm773, %v668
  %798 = vst.msk [vmem:[%s5 + $0x60] sm:$0xf] %vm773, %v669
  %799 = vst.msk [vmem:[%s5 + $0x64] sm:$0xf] %vm773, %v670
  %800 = vst.msk [vmem:[%s5 + $0x68] sm:$0xf] %vm773, %v671
  %801 = vst.msk [vmem:[%s5 + $0x6c] sm:$0xf] %vm773, %v672
  %802 = vst.msk [vmem:[%s5 + $0x70] sm:$0xf] %vm773, %v673
  %803 = vst.msk [vmem:[%s5 + $0x74] sm:$0xf] %vm773, %v674
  %804 = vst.msk [vmem:[%s5 + $0x78] sm:$0xf] %vm773, %v675
  %805 = vst.msk [vmem:[%s5 + $0x7c] sm:$0xf] %vm773, %v676
  %806 = vst.msk [vmem:[%s5 + $0x80] sm:$0xf] %vm773, %v677
  %807 = vst.msk [vmem:[%s5 + $0x84] sm:$0xf] %vm773, %v678
  %808 = vst.msk [vmem:[%s5 + $0x88] sm:$0xf] %vm773, %v679
  %809 = vst.msk [vmem:[%s5 + $0x8c] sm:$0xf] %vm773, %v680
  %810 = vst.msk [vmem:[%s5 + $0x90] sm:$0xf] %vm773, %v681
  %811 = vst.msk [vmem:[%s5 + $0x94] sm:$0xf] %vm773, %v682
  %812 = vst.msk [vmem:[%s5 + $0x98] sm:$0xf] %vm773, %v683
  %813 = vst.msk [vmem:[%s5 + $0x9c] sm:$0xf] %vm773, %v684
  %814 = vst.msk [vmem:[%s5 + $0xa0] sm:$0xf] %vm773, %v685
  %815 = vst.msk [vmem:[%s5 + $0xa4] sm:$0xf] %vm773, %v686
  %816 = vst.msk [vmem:[%s5 + $0xa8] sm:$0xf] %vm773, %v687
  %817 = vst.msk [vmem:[%s5 + $0xac] sm:$0xf] %vm773, %v688
  %818 = vst.msk [vmem:[%s5 + $0xb0] sm:$0xf] %vm773, %v689
  %819 = vst.msk [vmem:[%s5 + $0xb4] sm:$0xf] %vm773, %v690
  %820 = vst.msk [vmem:[%s5 + $0xb8] sm:$0xf] %vm773, %v691
  %821 = vst.msk [vmem:[%s5 + $0xbc] sm:$0xf] %vm773, %v692
  %822 = vst.msk [vmem:[%s5 + $0xc0] sm:$0xf] %vm773, %v693
  %823 = vst.msk [vmem:[%s5 + $0xc4] sm:$0xf] %vm773, %v694
  %824 = vst.msk [vmem:[%s5 + $0xc8] sm:$0xf] %vm773, %v695
  %825 = vst.msk [vmem:[%s5 + $0xcc] sm:$0xf] %vm773, %v696
  %826 = vst.msk [vmem:[%s5 + $0xd0] sm:$0xf] %vm773, %v697
  %827 = vst.msk [vmem:[%s5 + $0xd4] sm:$0xf] %vm773, %v698
  %828 = vst.msk [vmem:[%s5 + $0xd8] sm:$0xf] %vm773, %v699
  %829 = vst.msk [vmem:[%s5 + $0xdc] sm:$0xf] %vm773, %v700
  %830 = vst.msk [vmem:[%s5 + $0xe0] sm:$0xf] %vm773, %v701
  %831 = vst.msk [vmem:[%s5 + $0xe4] sm:$0xf] %vm773, %v702
  %832 = vst.msk [vmem:[%s5 + $0xe8] sm:$0xf] %vm773, %v703
  %833 = vst.msk [vmem:[%s5 + $0xec] sm:$0xf] %vm773, %v704
  %834 = vst.msk [vmem:[%s5 + $0xf0] sm:$0xf] %vm773, %v705
  %835 = vst.msk [vmem:[%s5 + $0xf4] sm:$0xf] %vm773, %v706
  %836 = vst.msk [vmem:[%s5 + $0xf8] sm:$0xf] %vm773, %v707
  %837 = vst.msk [vmem:[%s5 + $0xfc] sm:$0xf] %vm773, %v708
  %v838 = vld [vmem:[%s3] sm:$0xf]
  %v839 = vld [vmem:[%s4] sm:$0x1]
  %v841 = vlaneseq
  %v842 = vshrl.u32 %v841, 7
  %v843 = vsub.s32 0, %v842
  %v844 = vrot.slane %v839, %v843
  %v847 = vsel %vm224, %v838, 0
  %849 = vmatprep.subr.bf16.mxu0 0
  %850 = vmatpush1.bf16.msra.mxu0 %v847
  %851 = vmatprep.subr.bf16.mxu0 0
  %852 = vmatpush1.bf16.msra.mxu0 0
  %853 = vmatprep.subr.bf16.mxu0 0
  %854 = vmatpush1.bf16.msra.mxu0 0
  %855 = vmatprep.subr.bf16.mxu0 0
  %856 = vmatpush1.bf16.msra.mxu0 0
  %857 = vmatprep.subr.bf16.mxu0 0
  %858 = vmatpush1.bf16.msra.mxu0 0
  %859 = vmatprep.subr.bf16.mxu0 0
  %860 = vmatpush1.bf16.msra.mxu0 0
  %861 = vmatprep.subr.bf16.mxu0 0
  %862 = vmatpush1.bf16.msra.mxu0 0
  %863 = vmatprep.subr.bf16.mxu0 0
  %864 = vmatpush1.bf16.msra.mxu0 0
  %865 = vmatprep.subr.bf16.mxu0 0
  %866 = vmatpush1.bf16.msra.mxu0 0
  %867 = vmatprep.subr.bf16.mxu0 0
  %868 = vmatpush1.bf16.msra.mxu0 0
  %869 = vmatprep.subr.bf16.mxu0 0
  %870 = vmatpush1.bf16.msra.mxu0 0
  %871 = vmatprep.subr.bf16.mxu0 0
  %872 = vmatpush1.bf16.msra.mxu0 0
  %873 = vmatprep.subr.bf16.mxu0 0
  %874 = vmatpush1.bf16.msra.mxu0 0
  %875 = vmatprep.subr.bf16.mxu0 0
  %876 = vmatpush1.bf16.msra.mxu0 0
  %877 = vmatprep.subr.bf16.mxu0 0
  %878 = vmatpush1.bf16.msra.mxu0 0
  %879 = vmatprep.subr.bf16.mxu0 0
  %880 = vmatpush1.bf16.msra.mxu0 0
  %881 = vmatprep.mubr.bf16.mxu0 0
  %882 = vmatmul.mubr.bf16.gmra.mrb[0].mxu0 %v129
  %v883 = vpop.f32.mrb[0].mxu0
  %v884 = vadd.f32 %v844, %v883
  %v885 = vpop.f32.mrb[0].mxu0
  %v886 = vpop.f32.mrb[0].mxu0
  %v887 = vadd.f32 %v844, %v886
  %v888 = vpop.f32.mrb[0].mxu0
  %889 = vmatprep.mubr.bf16.mxu0 0
  %890 = vmatmul.mubr.bf16.gmra.mrb[0].mxu0 %v132
  %v891 = vpop.f32.mrb[0].mxu0
  %v892 = vadd.f32 %v844, %v891
  %v893 = vpop.f32.mrb[0].mxu0
  %v894 = vpop.f32.mrb[0].mxu0
  %v895 = vadd.f32 %v844, %v894
  %v896 = vpop.f32.mrb[0].mxu0
  %897 = vmatprep.mubr.bf16.mxu0 0
  %898 = vmatmul.mubr.bf16.gmra.mrb[0].mxu0 %v135
  %v899 = vpop.f32.mrb[0].mxu0
  %v900 = vadd.f32 %v844, %v899
  %v901 = vpop.f32.mrb[0].mxu0
  %v902 = vpop.f32.mrb[0].mxu0
  %v903 = vadd.f32 %v844, %v902
  %v904 = vpop.f32.mrb[0].mxu0
  %905 = vmatprep.mubr.bf16.mxu0 0
  %906 = vmatmul.mubr.bf16.gmra.mrb[0].mxu0 %v138
  %v907 = vpop.f32.mrb[0].mxu0
  %v908 = vadd.f32 %v844, %v907
  %v909 = vpop.f32.mrb[0].mxu0
  %v910 = vpop.f32.mrb[0].mxu0
  %v911 = vadd.f32 %v844, %v910
  %v912 = vpop.f32.mrb[0].mxu0
  %913 = vmatprep.mubr.bf16.mxu0 0
  %914 = vmatmul.mubr.bf16.gmra.mrb[0].mxu0 %v141
  %v915 = vpop.f32.mrb[0].mxu0
  %v916 = vadd.f32 %v844, %v915
  %v917 = vpop.f32.mrb[0].mxu0
  %v918 = vpop.f32.mrb[0].mxu0
  %v919 = vadd.f32 %v844, %v918
  %v920 = vpop.f32.mrb[0].mxu0
  %921 = vmatprep.mubr.bf16.mxu0 0
  %922 = vmatmul.mubr.bf16.gmra.mrb[0].mxu0 %v144
  %v923 = vpop.f32.mrb[0].mxu0
  %v924 = vadd.f32 %v844, %v923
  %v925 = vpop.f32.mrb[0].mxu0
  %v926 = vpop.f32.mrb[0].mxu0
  %v927 = vadd.f32 %v844, %v926
  %v928 = vpop.f32.mrb[0].mxu0
  %929 = vmatprep.mubr.bf16.mxu0 0
  %930 = vmatmul.mubr.bf16.gmra.mrb[0].mxu0 %v147
  %v931 = vpop.f32.mrb[0].mxu0
  %v932 = vadd.f32 %v844, %v931
  %v933 = vpop.f32.mrb[0].mxu0
  %v934 = vpop.f32.mrb[0].mxu0
  %v935 = vadd.f32 %v844, %v934
  %v936 = vpop.f32.mrb[0].mxu0
  %937 = vmatprep.mubr.bf16.mxu0 0
  %938 = vmatmul.mubr.bf16.gmra.mrb[0].mxu0 %v150
  %v939 = vpop.f32.mrb[0].mxu0
  %v940 = vadd.f32 %v844, %v939
  %v941 = vpop.f32.mrb[0].mxu0
  %v942 = vpop.f32.mrb[0].mxu0
  %v943 = vadd.f32 %v844, %v942
  %v944 = vpop.f32.mrb[0].mxu0
  %945 = vmatprep.mubr.bf16.mxu0 0
  %946 = vmatmul.mubr.bf16.gmra.mrb[0].mxu0 %v153
  %v947 = vpop.f32.mrb[0].mxu0
  %v948 = vadd.f32 %v844, %v947
  %v949 = vpop.f32.mrb[0].mxu0
  %v950 = vpop.f32.mrb[0].mxu0
  %v951 = vadd.f32 %v844, %v950
  %v952 = vpop.f32.mrb[0].mxu0
  %953 = vmatprep.mubr.bf16.mxu0 0
  %954 = vmatmul.mubr.bf16.gmra.mrb[0].mxu0 %v156
  %v955 = vpop.f32.mrb[0].mxu0
  %v956 = vadd.f32 %v844, %v955
  %v957 = vpop.f32.mrb[0].mxu0
  %v958 = vpop.f32.mrb[0].mxu0
  %v959 = vadd.f32 %v844, %v958
  %v960 = vpop.f32.mrb[0].mxu0
  %961 = vmatprep.mubr.bf16.mxu0 0
  %962 = vmatmul.mubr.bf16.gmra.mrb[0].mxu0 %v159
  %v963 = vpop.f32.mrb[0].mxu0
  %v964 = vadd.f32 %v844, %v963
  %v965 = vpop.f32.mrb[0].mxu0
  %v966 = vpop.f32.mrb[0].mxu0
  %v967 = vadd.f32 %v844, %v966
  %v968 = vpop.f32.mrb[0].mxu0
  %969 = vmatprep.mubr.bf16.mxu0 0
  %970 = vmatmul.mubr.bf16.gmra.mrb[0].mxu0 %v162
  %v971 = vpop.f32.mrb[0].mxu0
  %v972 = vadd.f32 %v844, %v971
  %v973 = vpop.f32.mrb[0].mxu0
  %v974 = vpop.f32.mrb[0].mxu0
  %v975 = vadd.f32 %v844, %v974
  %v976 = vpop.f32.mrb[0].mxu0
  %977 = vmatprep.mubr.bf16.mxu0 0
  %978 = vmatmul.mubr.bf16.gmra.mrb[0].mxu0 %v165
  %v979 = vpop.f32.mrb[0].mxu0
  %v980 = vadd.f32 %v844, %v979
  %v981 = vpop.f32.mrb[0].mxu0
  %v982 = vpop.f32.mrb[0].mxu0
  %v983 = vadd.f32 %v844, %v982
  %v984 = vpop.f32.mrb[0].mxu0
  %985 = vmatprep.mubr.bf16.mxu0 0
  %986 = vmatmul.mubr.bf16.gmra.mrb[0].mxu0 %v168
  %v987 = vpop.f32.mrb[0].mxu0
  %v988 = vadd.f32 %v844, %v987
  %v989 = vpop.f32.mrb[0].mxu0
  %v990 = vpop.f32.mrb[0].mxu0
  %v991 = vadd.f32 %v844, %v990
  %v992 = vpop.f32.mrb[0].mxu0
  %993 = vmatprep.mubr.bf16.mxu0 0
  %994 = vmatmul.mubr.bf16.gmra.mrb[0].mxu0 %v171
  %v995 = vpop.f32.mrb[0].mxu0
  %v996 = vadd.f32 %v844, %v995
  %v997 = vpop.f32.mrb[0].mxu0
  %v998 = vpop.f32.mrb[0].mxu0
  %v999 = vadd.f32 %v844, %v998
  %v1000 = vpop.f32.mrb[0].mxu0
  %1001 = vmatprep.mubr.bf16.mxu0 0
  %1002 = vmatmul.mubr.bf16.gmra.mrb[0].mxu0 %v174
  %v1003 = vpop.f32.mrb[0].mxu0
  %v1004 = vadd.f32 %v844, %v1003
  %v1005 = vpop.f32.mrb[0].mxu0
  %v1006 = vpop.f32.mrb[0].mxu0
  %v1007 = vadd.f32 %v844, %v1006
  %v1008 = vpop.f32.mrb[0].mxu0
  %1009 = vmatprep.mubr.bf16.mxu0 0
  %1010 = vmatmul.mubr.bf16.gmra.mrb[0].mxu0 %v177
  %v1011 = vpop.f32.mrb[0].mxu0
  %v1012 = vadd.f32 %v844, %v1011
  %v1013 = vpop.f32.mrb[0].mxu0
  %v1014 = vpop.f32.mrb[0].mxu0
  %v1015 = vadd.f32 %v844, %v1014
  %v1016 = vpop.f32.mrb[0].mxu0
  %1017 = vmatprep.mubr.bf16.mxu0 0
  %1018 = vmatmul.mubr.bf16.gmra.mrb[0].mxu0 %v180
  %v1019 = vpop.f32.mrb[0].mxu0
  %v1020 = vadd.f32 %v844, %v1019
  %v1021 = vpop.f32.mrb[0].mxu0
  %v1022 = vpop.f32.mrb[0].mxu0
  %v1023 = vadd.f32 %v844, %v1022
  %v1024 = vpop.f32.mrb[0].mxu0
  %1025 = vmatprep.mubr.bf16.mxu0 0
  %1026 = vmatmul.mubr.bf16.gmra.mrb[0].mxu0 %v183
  %v1027 = vpop.f32.mrb[0].mxu0
  %v1028 = vadd.f32 %v844, %v1027
  %v1029 = vpop.f32.mrb[0].mxu0
  %v1030 = vpop.f32.mrb[0].mxu0
  %v1031 = vadd.f32 %v844, %v1030
  %v1032 = vpop.f32.mrb[0].mxu0
  %1033 = vmatprep.mubr.bf16.mxu0 0
  %1034 = vmatmul.mubr.bf16.gmra.mrb[0].mxu0 %v186
  %v1035 = vpop.f32.mrb[0].mxu0
  %v1036 = vadd.f32 %v844, %v1035
  %v1037 = vpop.f32.mrb[0].mxu0
  %v1038 = vpop.f32.mrb[0].mxu0
  %v1039 = vadd.f32 %v844, %v1038
  %v1040 = vpop.f32.mrb[0].mxu0
  %1041 = vmatprep.mubr.bf16.mxu0 0
  %1042 = vmatmul.mubr.bf16.gmra.mrb[0].mxu0 %v189
  %v1043 = vpop.f32.mrb[0].mxu0
  %v1044 = vadd.f32 %v844, %v1043
  %v1045 = vpop.f32.mrb[0].mxu0
  %v1046 = vpop.f32.mrb[0].mxu0
  %v1047 = vadd.f32 %v844, %v1046
  %v1048 = vpop.f32.mrb[0].mxu0
  %1049 = vmatprep.mubr.bf16.mxu0 0
  %1050 = vmatmul.mubr.bf16.gmra.mrb[0].mxu0 %v192
  %v1051 = vpop.f32.mrb[0].mxu0
  %v1052 = vadd.f32 %v844, %v1051
  %v1053 = vpop.f32.mrb[0].mxu0
  %v1054 = vpop.f32.mrb[0].mxu0
  %v1055 = vadd.f32 %v844, %v1054
  %v1056 = vpop.f32.mrb[0].mxu0
  %1057 = vmatprep.mubr.bf16.mxu0 0
  %1058 = vmatmul.mubr.bf16.gmra.mrb[0].mxu0 %v195
  %v1059 = vpop.f32.mrb[0].mxu0
  %v1060 = vadd.f32 %v844, %v1059
  %v1061 = vpop.f32.mrb[0].mxu0
  %v1062 = vpop.f32.mrb[0].mxu0
  %v1063 = vadd.f32 %v844, %v1062
  %v1064 = vpop.f32.mrb[0].mxu0
  %1065 = vmatprep.mubr.bf16.mxu0 0
  %1066 = vmatmul.mubr.bf16.gmra.mrb[0].mxu0 %v198
  %v1067 = vpop.f32.mrb[0].mxu0
  %v1068 = vadd.f32 %v844, %v1067
  %v1069 = vpop.f32.mrb[0].mxu0
  %v1070 = vpop.f32.mrb[0].mxu0
  %v1071 = vadd.f32 %v844, %v1070
  %v1072 = vpop.f32.mrb[0].mxu0
  %1073 = vmatprep.mubr.bf16.mxu0 0
  %1074 = vmatmul.mubr.bf16.gmra.mrb[0].mxu0 %v201
  %v1075 = vpop.f32.mrb[0].mxu0
  %v1076 = vadd.f32 %v844, %v1075
  %v1077 = vpop.f32.mrb[0].mxu0
  %v1078 = vpop.f32.mrb[0].mxu0
  %v1079 = vadd.f32 %v844, %v1078
  %v1080 = vpop.f32.mrb[0].mxu0
  %1081 = vmatprep.mubr.bf16.mxu0 0
  %1082 = vmatmul.mubr.bf16.gmra.mrb[0].mxu0 %v204
  %v1083 = vpop.f32.mrb[0].mxu0
  %v1084 = vadd.f32 %v844, %v1083
  %v1085 = vpop.f32.mrb[0].mxu0
  %v1086 = vpop.f32.mrb[0].mxu0
  %v1087 = vadd.f32 %v844, %v1086
  %v1088 = vpop.f32.mrb[0].mxu0
  %1089 = vmatprep.mubr.bf16.mxu0 0
  %1090 = vmatmul.mubr.bf16.gmra.mrb[0].mxu0 %v207
  %v1091 = vpop.f32.mrb[0].mxu0
  %v1092 = vadd.f32 %v844, %v1091
  %v1093 = vpop.f32.mrb[0].mxu0
  %v1094 = vpop.f32.mrb[0].mxu0
  %v1095 = vadd.f32 %v844, %v1094
  %v1096 = vpop.f32.mrb[0].mxu0
  %1097 = vmatprep.mubr.bf16.mxu0 0
  %1098 = vmatmul.mubr.bf16.gmra.mrb[0].mxu0 %v210
  %v1099 = vpop.f32.mrb[0].mxu0
  %v1100 = vadd.f32 %v844, %v1099
  %v1101 = vpop.f32.mrb[0].mxu0
  %v1102 = vpop.f32.mrb[0].mxu0
  %v1103 = vadd.f32 %v844, %v1102
  %v1104 = vpop.f32.mrb[0].mxu0
  %1105 = vmatprep.mubr.bf16.mxu0 0
  %1106 = vmatmul.mubr.bf16.gmra.mrb[0].mxu0 %v213
  %v1107 = vpop.f32.mrb[0].mxu0
  %v1108 = vadd.f32 %v844, %v1107
  %v1109 = vpop.f32.mrb[0].mxu0
  %v1110 = vpop.f32.mrb[0].mxu0
  %v1111 = vadd.f32 %v844, %v1110
  %v1112 = vpop.f32.mrb[0].mxu0
  %1113 = vmatprep.mubr.bf16.mxu0 0
  %1114 = vmatmul.mubr.bf16.gmra.mrb[0].mxu0 %v216
  %v1115 = vpop.f32.mrb[0].mxu0
  %v1116 = vadd.f32 %v844, %v1115
  %v1117 = vpop.f32.mrb[0].mxu0
  %v1118 = vpop.f32.mrb[0].mxu0
  %v1119 = vadd.f32 %v844, %v1118
  %v1120 = vpop.f32.mrb[0].mxu0
  %1121 = vmatprep.mubr.bf16.mxu0 0
  %1122 = vmatmul.mubr.bf16.gmra.mrb[0].mxu0 %v219
  %v1123 = vpop.f32.mrb[0].mxu0
  %v1124 = vadd.f32 %v844, %v1123
  %v1125 = vpop.f32.mrb[0].mxu0
  %v1126 = vpop.f32.mrb[0].mxu0
  %v1127 = vadd.f32 %v844, %v1126
  %v1128 = vpop.f32.mrb[0].mxu0
  %1129 = vmatprep.mubr.bf16.mxu0 0
  %1130 = vmatmul.mubr.bf16.gmra.mrb[0].mxu0 %v222
  %v1131 = vpop.f32.mrb[0].mxu0
  %v1132 = vadd.f32 %v844, %v1131
  %v1133 = vpop.f32.mrb[0].mxu0
  %v1134 = vpop.f32.mrb[0].mxu0
  %v1135 = vadd.f32 %v844, %v1134
  %v1136 = vpop.f32.mrb[0].mxu0
  %1137 = vdwg.mxu0
  %v1138 = vpack.c.bf16 %v887, %v884
  %v1139 = vpack.c.bf16 %v895, %v892
  %v1140 = vpack.c.bf16 %v903, %v900
  %v1141 = vpack.c.bf16 %v911, %v908
  %v1142 = vpack.c.bf16 %v919, %v916
  %v1143 = vpack.c.bf16 %v927, %v924
  %v1144 = vpack.c.bf16 %v935, %v932
  %v1145 = vpack.c.bf16 %v943, %v940
  %v1146 = vpack.c.bf16 %v951, %v948
  %v1147 = vpack.c.bf16 %v959, %v956
  %v1148 = vpack.c.bf16 %v967, %v964
  %v1149 = vpack.c.bf16 %v975, %v972
  %v1150 = vpack.c.bf16 %v983, %v980
  %v1151 = vpack.c.bf16 %v991, %v988
  %v1152 = vpack.c.bf16 %v999, %v996
  %v1153 = vpack.c.bf16 %v1007, %v1004
  %v1154 = vpack.c.bf16 %v1015, %v1012
  %v1155 = vpack.c.bf16 %v1023, %v1020
  %v1156 = vpack.c.bf16 %v1031, %v1028
  %v1157 = vpack.c.bf16 %v1039, %v1036
  %v1158 = vpack.c.bf16 %v1047, %v1044
  %v1159 = vpack.c.bf16 %v1055, %v1052
  %v1160 = vpack.c.bf16 %v1063, %v1060
  %v1161 = vpack.c.bf16 %v1071, %v1068
  %v1162 = vpack.c.bf16 %v1079, %v1076
  %v1163 = vpack.c.bf16 %v1087, %v1084
  %v1164 = vpack.c.bf16 %v1095, %v1092
  %v1165 = vpack.c.bf16 %v1103, %v1100
  %v1166 = vpack.c.bf16 %v1111, %v1108
  %v1167 = vpack.c.bf16 %v1119, %v1116
  %v1168 = vpack.c.bf16 %v1127, %v1124
  %v1169 = vpack.c.bf16 %v1135, %v1132
  %v1202 = vunpack.c.l.b16 %v1138
  %v1203 = vunpack.c.h.b16 %v1138
  %v1204 = vunpack.c.l.b16 %v1139
  %v1205 = vunpack.c.h.b16 %v1139
  %v1206 = vunpack.c.l.b16 %v1140
  %v1207 = vunpack.c.h.b16 %v1140
  %v1208 = vunpack.c.l.b16 %v1141
  %v1209 = vunpack.c.h.b16 %v1141
  %v1210 = vunpack.c.l.b16 %v1142
  %v1211 = vunpack.c.h.b16 %v1142
  %v1212 = vunpack.c.l.b16 %v1143
  %v1213 = vunpack.c.h.b16 %v1143
  %v1214 = vunpack.c.l.b16 %v1144
  %v1215 = vunpack.c.h.b16 %v1144
  %v1216 = vunpack.c.l.b16 %v1145
  %v1217 = vunpack.c.h.b16 %v1145
  %v1218 = vunpack.c.l.b16 %v1146
  %v1219 = vunpack.c.h.b16 %v1146
  %v1220 = vunpack.c.l.b16 %v1147
  %v1221 = vunpack.c.h.b16 %v1147
  %v1222 = vunpack.c.l.b16 %v1148
  %v1223 = vunpack.c.h.b16 %v1148
  %v1224 = vunpack.c.l.b16 %v1149
  %v1225 = vunpack.c.h.b16 %v1149
  %v1226 = vunpack.c.l.b16 %v1150
  %v1227 = vunpack.c.h.b16 %v1150
  %v1228 = vunpack.c.l.b16 %v1151
  %v1229 = vunpack.c.h.b16 %v1151
  %v1230 = vunpack.c.l.b16 %v1152
  %v1231 = vunpack.c.h.b16 %v1152
  %v1232 = vunpack.c.l.b16 %v1153
  %v1233 = vunpack.c.h.b16 %v1153
  %v1234 = vunpack.c.l.b16 %v1154
  %v1235 = vunpack.c.h.b16 %v1154
  %v1236 = vunpack.c.l.b16 %v1155
  %v1237 = vunpack.c.h.b16 %v1155
  %v1238 = vunpack.c.l.b16 %v1156
  %v1239 = vunpack.c.h.b16 %v1156
  %v1240 = vunpack.c.l.b16 %v1157
  %v1241 = vunpack.c.h.b16 %v1157
  %v1242 = vunpack.c.l.b16 %v1158
  %v1243 = vunpack.c.h.b16 %v1158
  %v1244 = vunpack.c.l.b16 %v1159
  %v1245 = vunpack.c.h.b16 %v1159
  %v1246 = vunpack.c.l.b16 %v1160
  %v1247 = vunpack.c.h.b16 %v1160
  %v1248 = vunpack.c.l.b16 %v1161
  %v1249 = vunpack.c.h.b16 %v1161
  %v1250 = vunpack.c.l.b16 %v1162
  %v1251 = vunpack.c.h.b16 %v1162
  %v1252 = vunpack.c.l.b16 %v1163
  %v1253 = vunpack.c.h.b16 %v1163
  %v1254 = vunpack.c.l.b16 %v1164
  %v1255 = vunpack.c.h.b16 %v1164
  %v1256 = vunpack.c.l.b16 %v1165
  %v1257 = vunpack.c.h.b16 %v1165
  %v1258 = vunpack.c.l.b16 %v1166
  %v1259 = vunpack.c.h.b16 %v1166
  %v1260 = vunpack.c.l.b16 %v1167
  %v1261 = vunpack.c.h.b16 %v1167
  %v1262 = vunpack.c.l.b16 %v1168
  %v1263 = vunpack.c.h.b16 %v1168
  %v1264 = vunpack.c.l.b16 %v1169
  %v1265 = vunpack.c.h.b16 %v1169
  %v1266 = vpack.c.b16 %v1202, %v1202
  %v1267 = vpack.c.b16 %v1203, %v1203
  %v1268 = vpack.c.b16 %v1204, %v1204
  %v1269 = vpack.c.b16 %v1205, %v1205
  %v1270 = vpack.c.b16 %v1206, %v1206
  %v1271 = vpack.c.b16 %v1207, %v1207
  %v1272 = vpack.c.b16 %v1208, %v1208
  %v1273 = vpack.c.b16 %v1209, %v1209
  %v1274 = vpack.c.b16 %v1210, %v1210
  %v1275 = vpack.c.b16 %v1211, %v1211
  %v1276 = vpack.c.b16 %v1212, %v1212
  %v1277 = vpack.c.b16 %v1213, %v1213
  %v1278 = vpack.c.b16 %v1214, %v1214
  %v1279 = vpack.c.b16 %v1215, %v1215
  %v1280 = vpack.c.b16 %v1216, %v1216
  %v1281 = vpack.c.b16 %v1217, %v1217
  %v1282 = vpack.c.b16 %v1218, %v1218
  %v1283 = vpack.c.b16 %v1219, %v1219
  %v1284 = vpack.c.b16 %v1220, %v1220
  %v1285 = vpack.c.b16 %v1221, %v1221
  %v1286 = vpack.c.b16 %v1222, %v1222
  %v1287 = vpack.c.b16 %v1223, %v1223
  %v1288 = vpack.c.b16 %v1224, %v1224
  %v1289 = vpack.c.b16 %v1225, %v1225
  %v1290 = vpack.c.b16 %v1226, %v1226
  %v1291 = vpack.c.b16 %v1227, %v1227
  %v1292 = vpack.c.b16 %v1228, %v1228
  %v1293 = vpack.c.b16 %v1229, %v1229
  %v1294 = vpack.c.b16 %v1230, %v1230
  %v1295 = vpack.c.b16 %v1231, %v1231
  %v1296 = vpack.c.b16 %v1232, %v1232
  %v1297 = vpack.c.b16 %v1233, %v1233
  %v1298 = vpack.c.b16 %v1234, %v1234
  %v1299 = vpack.c.b16 %v1235, %v1235
  %v1300 = vpack.c.b16 %v1236, %v1236
  %v1301 = vpack.c.b16 %v1237, %v1237
  %v1302 = vpack.c.b16 %v1238, %v1238
  %v1303 = vpack.c.b16 %v1239, %v1239
  %v1304 = vpack.c.b16 %v1240, %v1240
  %v1305 = vpack.c.b16 %v1241, %v1241
  %v1306 = vpack.c.b16 %v1242, %v1242
  %v1307 = vpack.c.b16 %v1243, %v1243
  %v1308 = vpack.c.b16 %v1244, %v1244
  %v1309 = vpack.c.b16 %v1245, %v1245
  %v1310 = vpack.c.b16 %v1246, %v1246
  %v1311 = vpack.c.b16 %v1247, %v1247
  %v1312 = vpack.c.b16 %v1248, %v1248
  %v1313 = vpack.c.b16 %v1249, %v1249
  %v1314 = vpack.c.b16 %v1250, %v1250
  %v1315 = vpack.c.b16 %v1251, %v1251
  %v1316 = vpack.c.b16 %v1252, %v1252
  %v1317 = vpack.c.b16 %v1253, %v1253
  %v1318 = vpack.c.b16 %v1254, %v1254
  %v1319 = vpack.c.b16 %v1255, %v1255
  %v1320 = vpack.c.b16 %v1256, %v1256
  %v1321 = vpack.c.b16 %v1257, %v1257
  %v1322 = vpack.c.b16 %v1258, %v1258
  %v1323 = vpack.c.b16 %v1259, %v1259
  %v1324 = vpack.c.b16 %v1260, %v1260
  %v1325 = vpack.c.b16 %v1261, %v1261
  %v1326 = vpack.c.b16 %v1262, %v1262
  %v1327 = vpack.c.b16 %v1263, %v1263
  %v1328 = vpack.c.b16 %v1264, %v1264
  %v1329 = vpack.c.b16 %v1265, %v1265
  %vm1394 = vcmask 125952
  %1395 = vst.msk [vmem:[%s6] sm:$0xf] %vm1394, %v1266
  %1396 = vst.msk [vmem:[%s6 + $0x4] sm:$0xf] %vm1394, %v1267
  %1397 = vst.msk [vmem:[%s6 + $0x8] sm:$0xf] %vm1394, %v1268
  %1398 = vst.msk [vmem:[%s6 + $0xc] sm:$0xf] %vm1394, %v1269
  %1399 = vst.msk [vmem:[%s6 + $0x10] sm:$0xf] %vm1394, %v1270
  %1400 = vst.msk [vmem:[%s6 + $0x14] sm:$0xf] %vm1394, %v1271
  %1401 = vst.msk [vmem:[%s6 + $0x18] sm:$0xf] %vm1394, %v1272
  %1402 = vst.msk [vmem:[%s6 + $0x1c] sm:$0xf] %vm1394, %v1273
  %1403 = vst.msk [vmem:[%s6 + $0x20] sm:$0xf] %vm1394, %v1274
  %1404 = vst.msk [vmem:[%s6 + $0x24] sm:$0xf] %vm1394, %v1275
  %1405 = vst.msk [vmem:[%s6 + $0x28] sm:$0xf] %vm1394, %v1276
  %1406 = vst.msk [vmem:[%s6 + $0x2c] sm:$0xf] %vm1394, %v1277
  %1407 = vst.msk [vmem:[%s6 + $0x30] sm:$0xf] %vm1394, %v1278
  %1408 = vst.msk [vmem:[%s6 + $0x34] sm:$0xf] %vm1394, %v1279
  %1409 = vst.msk [vmem:[%s6 + $0x38] sm:$0xf] %vm1394, %v1280
  %1410 = vst.msk [vmem:[%s6 + $0x3c] sm:$0xf] %vm1394, %v1281
  %1411 = vst.msk [vmem:[%s6 + $0x40] sm:$0xf] %vm1394, %v1282
  %1412 = vst.msk [vmem:[%s6 + $0x44] sm:$0xf] %vm1394, %v1283
  %1413 = vst.msk [vmem:[%s6 + $0x48] sm:$0xf] %vm1394, %v1284
  %1414 = vst.msk [vmem:[%s6 + $0x4c] sm:$0xf] %vm1394, %v1285
  %1415 = vst.msk [vmem:[%s6 + $0x50] sm:$0xf] %vm1394, %v1286
  %1416 = vst.msk [vmem:[%s6 + $0x54] sm:$0xf] %vm1394, %v1287
  %1417 = vst.msk [vmem:[%s6 + $0x58] sm:$0xf] %vm1394, %v1288
  %1418 = vst.msk [vmem:[%s6 + $0x5c] sm:$0xf] %vm1394, %v1289
  %1419 = vst.msk [vmem:[%s6 + $0x60] sm:$0xf] %vm1394, %v1290
  %1420 = vst.msk [vmem:[%s6 + $0x64] sm:$0xf] %vm1394, %v1291
  %1421 = vst.msk [vmem:[%s6 + $0x68] sm:$0xf] %vm1394, %v1292
  %1422 = vst.msk [vmem:[%s6 + $0x6c] sm:$0xf] %vm1394, %v1293
  %1423 = vst.msk [vmem:[%s6 + $0x70] sm:$0xf] %vm1394, %v1294
  %1424 = vst.msk [vmem:[%s6 + $0x74] sm:$0xf] %vm1394, %v1295
  %1425 = vst.msk [vmem:[%s6 + $0x78] sm:$0xf] %vm1394, %v1296
  %1426 = vst.msk [vmem:[%s6 + $0x7c] sm:$0xf] %vm1394, %v1297
  %1427 = vst.msk [vmem:[%s6 + $0x80] sm:$0xf] %vm1394, %v1298
  %1428 = vst.msk [vmem:[%s6 + $0x84] sm:$0xf] %vm1394, %v1299
  %1429 = vst.msk [vmem:[%s6 + $0x88] sm:$0xf] %vm1394, %v1300
  %1430 = vst.msk [vmem:[%s6 + $0x8c] sm:$0xf] %vm1394, %v1301
  %1431 = vst.msk [vmem:[%s6 + $0x90] sm:$0xf] %vm1394, %v1302
  %1432 = vst.msk [vmem:[%s6 + $0x94] sm:$0xf] %vm1394, %v1303
  %1433 = vst.msk [vmem:[%s6 + $0x98] sm:$0xf] %vm1394, %v1304
  %1434 = vst.msk [vmem:[%s6 + $0x9c] sm:$0xf] %vm1394, %v1305
  %1435 = vst.msk [vmem:[%s6 + $0xa0] sm:$0xf] %vm1394, %v1306
  %1436 = vst.msk [vmem:[%s6 + $0xa4] sm:$0xf] %vm1394, %v1307
  %1437 = vst.msk [vmem:[%s6 + $0xa8] sm:$0xf] %vm1394, %v1308
  %1438 = vst.msk [vmem:[%s6 + $0xac] sm:$0xf] %vm1394, %v1309
  %1439 = vst.msk [vmem:[%s6 + $0xb0] sm:$0xf] %vm1394, %v1310
  %1440 = vst.msk [vmem:[%s6 + $0xb4] sm:$0xf] %vm1394, %v1311
  %1441 = vst.msk [vmem:[%s6 + $0xb8] sm:$0xf] %vm1394, %v1312
  %1442 = vst.msk [vmem:[%s6 + $0xbc] sm:$0xf] %vm1394, %v1313
  %1443 = vst.msk [vmem:[%s6 + $0xc0] sm:$0xf] %vm1394, %v1314
  %1444 = vst.msk [vmem:[%s6 + $0xc4] sm:$0xf] %vm1394, %v1315
  %1445 = vst.msk [vmem:[%s6 + $0xc8] sm:$0xf] %vm1394, %v1316
  %1446 = vst.msk [vmem:[%s6 + $0xcc] sm:$0xf] %vm1394, %v1317
  %1447 = vst.msk [vmem:[%s6 + $0xd0] sm:$0xf] %vm1394, %v1318
  %1448 = vst.msk [vmem:[%s6 + $0xd4] sm:$0xf] %vm1394, %v1319
  %1449 = vst.msk [vmem:[%s6 + $0xd8] sm:$0xf] %vm1394, %v1320
  %1450 = vst.msk [vmem:[%s6 + $0xdc] sm:$0xf] %vm1394, %v1321
  %1451 = vst.msk [vmem:[%s6 + $0xe0] sm:$0xf] %vm1394, %v1322
  %1452 = vst.msk [vmem:[%s6 + $0xe4] sm:$0xf] %vm1394, %v1323
  %1453 = vst.msk [vmem:[%s6 + $0xe8] sm:$0xf] %vm1394, %v1324
  %1454 = vst.msk [vmem:[%s6 + $0xec] sm:$0xf] %vm1394, %v1325
  %1455 = vst.msk [vmem:[%s6 + $0xf0] sm:$0xf] %vm1394, %v1326
  %1456 = vst.msk [vmem:[%s6 + $0xf4] sm:$0xf] %vm1394, %v1327
  %1457 = vst.msk [vmem:[%s6 + $0xf8] sm:$0xf] %vm1394, %v1328
  %1458 = vst.msk [vmem:[%s6 + $0xfc] sm:$0xf] %vm1394, %v1329
  // Predicated region
  $region22: #{tpu_custom_call.1} parent=0 // pred_check
    _
  $region23: #{tpu_custom_call.1} parent=0 // pred_check_branch
    %1460 = sbr.rel (0) target = $region25
  $region24: #{tpu_custom_call.1} parent=0 // pred_region
    _
  $region25: #{tpu_custom_call.1} parent=0 // pred_fallthru
    _
  // Predicated region
  $region26: #{tpu_custom_call.1} parent=0 // pred_check
    _
  $region27: #{tpu_custom_call.1} parent=0 // pred_check_branch
    %1462 = sbr.rel (0) target = $region29
  $region28: #{tpu_custom_call.1} parent=0 // pred_region
    _
  $region29: #{tpu_custom_call.1} parent=0 // pred_fallthru
    _
  // Predicated region
  $region30: #{tpu_custom_call.1} parent=0 // pred_check
    _
  $region31: #{tpu_custom_call.1} parent=0 // pred_check_branch
    %1464 = sbr.rel (0) target = $region33
  $region32: #{tpu_custom_call.1} parent=0 // pred_region
    _
  $region33: #{tpu_custom_call.1} parent=0 // pred_fallthru
    _
  // Predicated region
  $region34: #{tpu_custom_call.1} parent=0 // pred_check
    _
  $region35: #{tpu_custom_call.1} parent=0 // pred_check_branch
    %1466 = sbr.rel (0) target = $region37
  $region36: #{tpu_custom_call.1} parent=0 // pred_region
    _
  $region37: #{tpu_custom_call.1} parent=0 // pred_fallthru
    _

</llo_original>
